<compile_context>
chip_gen: v7x
topology: tpu7x:2x2x1
jax: 0.10.0
libtpu: 0.0.40
codegen_flags: <defaults>
</compile_context>

<pallas_src>
import functools

import numpy as np
import jax
import jax.numpy as jnp
from jax.experimental import pallas as pl
from jax.experimental.pallas import tpu as pltpu


# ----------------------------- Pallas kernel ------------------------------- #

def _fused_feature_kernel(*refs, ksizes, mxu_dtype):
    """spatial matmul -> per-channel FIR(s) -> gram for one batch block.

    refs = (x_ref, w_ref, b_ref, wtb_0, ..., wtb_{nf-1}, o_ref, xpad_ref)
      x_ref  : (Bblk, C, T)        input block (mxu_dtype)
      w_ref  : (D, C)              composed spatial weight (conv1*conv2*BN*repeat, *1/sqrt(T-1))
      b_ref  : (D, 1)              composed spatial bias (f32, *1/sqrt(T-1))
      wtb_i  : (D, K_i + 1)        depthwise FIR taps | bias (BN + gram scale folded, f32)
      o_ref  : (Bblk, 1, Dtot^2)   flattened gram (lane-dense store)
      xpad_ref: (Bblk, D, T+2*pad) VMEM scratch holding zero-padded spatial features
    """
    nf = len(ksizes)
    x_ref, w_ref, b_ref = refs[0], refs[1], refs[2]
    o_ref, xpad_ref = refs[3 + nf], refs[4 + nf]

    Bblk, C, T = x_ref.shape
    D = w_ref.shape[0]
    max_pad = max(K // 2 for K in ksizes)

    x = x_ref[...]                                          # (Bblk, C, T) mxu_dtype
    w = jnp.broadcast_to(w_ref[...], (Bblk, D, C))          # (Bblk, D, C) mxu_dtype

    # fused spatial stage: one batched MXU matmul replaces conv1 + conv2 + BN + repeat
    xs = (jnp.einsum("bdc,bct->bdt", w, x,
                     preferred_element_type=jnp.float32)
          + b_ref[...])                                     # (Bblk, D, T) f32

    # stage zero-padded spatial features in VMEM once; FIR taps become plain
    # (lane-unaligned) ref loads instead of materialized shifted copies.
    if max_pad:
        zpad = jnp.zeros((Bblk, D, max_pad), jnp.float32)
        xpad_ref[:, :, :max_pad] = zpad
        xpad_ref[:, :, max_pad + T:] = zpad
    xpad_ref[:, :, max_pad:max_pad + T] = xs

    parts = []
    for i, K in enumerate(ksizes):
        wtb = refs[3 + i][...]                              # (D, K+1): FIR taps | bias
        pad = K // 2
        acc = jnp.zeros((Bblk, D, T), jnp.float32)
        for k in range(K):                                  # static unroll over taps
            start = max_pad - pad + k
            acc = acc + wtb[:, k:k + 1] * xpad_ref[:, :, start:start + T]
        parts.append(acc + wtb[:, K:K + 1])
    # TODO(synk): for nf > 1 write each branch into rows of a (Bblk, nf*D, T) VMEM
    #             scratch instead of concatenating (saves one full ld/st copy).
    xt = parts[0] if nf == 1 else jnp.concatenate(parts, axis=1)   # (Bblk, Dtot, T)

    # gram: batched xt @ xt^T contracting the time axis (no transpose materialized);
    # the 1/(T-1) normalization is already folded into xt via the scaled weights.
    xt_m = xt.astype(mxu_dtype)
    g = jax.lax.dot_general(xt_m, xt_m, (((2,), (2,)), ((0,), (0,))),
                            preferred_element_type=jnp.float32)    # (Bblk, Dtot, Dtot)
    Dtot = g.shape[-1]

    # lane-dense store: pack gram rows along the lane axis -> (Bblk, 1, Dtot*Dtot)
    g_flat = jnp.concatenate([g[:, d:d + 1, :] for d in range(Dtot)], axis=2)
    o_ref[...] = g_flat.astype(o_ref.dtype)


# ------------------------------ stage wrapper ------------------------------- #

def _pick_batch_block(B, cap=8):
    """Largest divisor of B that is <= cap while leaving >=2 grid steps (if B >= 2)."""
    target = min(cap, max(1, B // 2))
    for bblk in range(target, 0, -1):
        if B % bblk == 0:
            return bblk
    return 1


def fused_feature_stage(x, w_full, b_full, temporal, *, mxu_dtype=jnp.bfloat16):
    """One fused pallas_call: spatial matmul -> temporal FIRs -> gram, per batch block."""
    B, C, T = x.shape
    D = w_full.shape[0]
    nf = len(temporal)
    Dtot = nf * D
    ksizes = tuple(int(K) for (_, _, K) in temporal)
    max_pad = max(K // 2 for K in ksizes)

    # Fold the gram's 1/(T-1) into the affine pipeline: scaling xs and the FIR
    # bias by s = 1/sqrt(T-1) scales xt by s, so xt @ xt^T is pre-normalized.
    s = 1.0 / np.sqrt(float(T - 1))
    w_in = (w_full * s).astype(mxu_dtype)
    b_in = (b_full * s).astype(jnp.float32)
    wtb_in = [jnp.concatenate([wt, bt * s], axis=1).astype(jnp.float32)
              for (wt, bt, _) in temporal]
    x_in = x.astype(mxu_dtype)

    bblk = _pick_batch_block(B)

    in_specs = [
        pl.BlockSpec((bblk, C, T), lambda i: (i, 0, 0)),
        pl.BlockSpec((D, C), lambda i: (0, 0)),
        pl.BlockSpec((D, 1), lambda i: (0, 0)),
    ]
    in_specs += [pl.BlockSpec((D, K + 1), lambda i: (0, 0)) for K in ksizes]

    out_flat = pl.pallas_call(
        functools.partial(_fused_feature_kernel, ksizes=ksizes, mxu_dtype=mxu_dtype),
        out_shape=jax.ShapeDtypeStruct((B, 1, Dtot * Dtot), jnp.float32),
        grid=(B // bblk,),
        in_specs=in_specs,
        out_specs=pl.BlockSpec((bblk, 1, Dtot * Dtot), lambda i: (i, 0, 0)),
        scratch_shapes=[pltpu.VMEM((bblk, D, T + 2 * max_pad), jnp.float32)],
        compiler_params=pltpu.CompilerParams(dimension_semantics=("parallel",)),
    )(x_in, w_in, b_in, *wtb_in)
    return out_flat.reshape(B, Dtot, Dtot)


# ------------------------- parameters (synthetic init) ---------------------- #

def init_csnet_params(key, n_chans, n_class=4, spatial_expansion=16, spatial_merge=8,
                      filters=(5,), temporal_expansion=2):
    """Deterministic synthetic parameters; shapes match CSNet_ST.__init__.

    BatchNorm2d layers use default/fresh statistics in eval mode and are folded
    into the preceding conv; the two spatial convs + the TE channel replication
    are additionally pre-composed into a single (D, C) weight / (D, 1) bias.
    """
    # TODO(synk): PyTorch training-mode BatchNorm (batch statistics) is not reproduced;
    #             eval-mode BN with default-initialized running stats is folded into the convs.
    C, SE, SM, TE = n_chans, spatial_expansion, spatial_merge, temporal_expansion
    eps = 1e-5
    nf = len(filters)
    ks = jax.random.split(key, 6 + 2 * nf)

    # spatial_convs[0]: Conv2d(1, SE, kernel=(C, 1))  -> weight (SE, C)
    w_sp1 = jax.random.normal(ks[0], (SE, C), jnp.float32) / np.sqrt(C)
    b_sp1 = 0.01 * jax.random.normal(ks[1], (SE, 1), jnp.float32)

    # spatial_convs[-1]: Conv2d(1, SM, kernel=(SE, 1)) + BatchNorm2d(SM)
    w_sp2 = jax.random.normal(ks[2], (SM, SE), jnp.float32) / np.sqrt(SE)
    b_sp2 = 0.01 * jax.random.normal(ks[3], (SM, 1), jnp.float32)
    a1 = jnp.ones((SM, 1), jnp.float32) / jnp.sqrt(jnp.ones((SM, 1), jnp.float32) + eps)
    w_sp2_eff = a1 * w_sp2
    b_sp2_eff = a1 * b_sp2

    # pre-compose spatial stage + TE channel replication:
    #   repeat(W2(W1 x + b1) + b2, TE, axis=0)  ==  W_full @ x + b_full
    w_sp = w_sp2_eff @ w_sp1                      # (SM, C)
    b_sp = w_sp2_eff @ b_sp1 + b_sp2_eff          # (SM, 1)
    w_full = jnp.repeat(w_sp, TE, axis=0)         # (D, C)
    b_full = jnp.repeat(b_sp, TE, axis=0)         # (D, 1)

    # temporal convs (depthwise, groups=SM, out=TE*SM) + BatchNorm2d(TE*SM)
    D = TE * SM
    temporal = []
    for i, K in enumerate(filters):
        assert K % 2 == 1, "temporal kernel sizes must be odd (padding = K//2 keeps T)"
        wk = jax.random.normal(ks[4 + 2 * i], (D, K), jnp.float32) / np.sqrt(K)
        bk = 0.01 * jax.random.normal(ks[5 + 2 * i], (D, 1), jnp.float32)
        a2 = jnp.ones((D, 1), jnp.float32) / jnp.sqrt(jnp.ones((D, 1), jnp.float32) + eps)
        temporal.append((a2 * wk, a2 * bk, int(K)))

    Dtot = nf * D
    F = Dtot * (Dtot + 1) // 2
    fc_w = jax.random.normal(ks[-2], (n_class, F), jnp.float32) / np.sqrt(F)
    fc_b = 0.01 * jax.random.normal(ks[-1], (1, n_class), jnp.float32)

    return dict(w_sp1=w_sp1, b_sp1=b_sp1,
                w_sp2_eff=w_sp2_eff, b_sp2_eff=b_sp2_eff,
                w_full=w_full, b_full=b_full,
                temporal=temporal, fc_wT=fc_w.T, fc_b=fc_b, TE=TE)


# ------------------------------ shared tail --------------------------------- #

def _cholesky_tangent(xb):
    """Cholesky + tangent-space vectorization (plain-JAX glue)."""
    D = xb.shape[-1]
    L = jnp.linalg.cholesky(xb)
    # TODO(synk): torch's try/except around torch.linalg.cholesky is emulated with a
    #             finite-value check + symmetrize/jitter recompute (JAX has no exceptions).
    xb_fix = 0.5 * (xb + jnp.swapaxes(xb, 1, 2)) + 1e-3 * jnp.eye(D, dtype=xb.dtype)
    L = jnp.where(jnp.all(jnp.isfinite(L)), L, jnp.linalg.cholesky(xb_fix))
    diag = jnp.diagonal(L, axis1=1, axis2=2)                       # (B, D)
    ri, ci = np.tril_indices(D, k=-1)                              # row-major, matches torch loop
    offdiag = L[:, ri, ci]                                         # (B, D(D-1)/2)
    return jnp.concatenate([jnp.log(diag), offdiag], axis=1)       # (B, D(D+1)/2)


# ------------------------------ forward passes ------------------------------ #

def csnet_st_forward(params, x, *, mxu_dtype=jnp.bfloat16):
    xb = fused_feature_stage(x, params["w_full"], params["b_full"],
                             params["temporal"], mxu_dtype=mxu_dtype)     # (B, Dtot, Dtot)
    tangent = _cholesky_tangent(xb)                                       # (B, Dtot(Dtot+1)/2)
    # Perf review: FC is a few kFLOPs; XLA fuses it with the tangent epilogue,
    # cheaper than a pallas_call launch + a 4-lane masked output store.
    return tangent @ params["fc_wT"] + params["fc_b"]


def reference_forward(params, x):
    """Pure-jnp f32 reference using the RAW (un-composed) weights for validation."""
    B, C, T = x.shape
    TE = params["TE"]
    h = jnp.einsum("oc,bct->bot", params["w_sp1"], x) + params["b_sp1"][None]
    xs = jnp.einsum("ms,bst->bmt", params["w_sp2_eff"], h) + params["b_sp2_eff"][None]
    xt_parts = []
    for (wt_eff, bt_eff, K) in params["temporal"]:
        xrep = jnp.repeat(xs, TE, axis=1)
        xpad = jnp.pad(xrep, ((0, 0), (0, 0), (K // 2, K // 2)))
        out = sum(wt_eff[None, :, k:k + 1] * xpad[:, :, k:k + T] for k in range(K))
        xt_parts.append(out + bt_eff[None])
    xt = jnp.concatenate(xt_parts, axis=1)
    xb = jnp.einsum("bdt,bet->bde", xt, xt) / (T - 1)
    tangent = _cholesky_tangent(xb)
    return tangent @ params["fc_wT"] + params["fc_b"]


# ----------------------------------- main ----------------------------------- #

if __name__ == "__main__":
    key = jax.random.PRNGKey(0)
    kx, kp = jax.random.split(key)

    # small shapes consistent with CSNet_ST(n_chans=4, n_class=4, SE=16, SM=8, filters=[5], TE=2)
    B, C, T = 2, 4, 32
    x = jax.random.normal(kx, (B, C, T), jnp.float32)

    params = init_csnet_params(kp, n_chans=C, n_class=4, spatial_expansion=16,
                               spatial_merge=8, filters=(5,), temporal_expansion=2)

    ref = jax.block_until_ready(reference_forward(params, x))

    # strict numeric check: f32 MXU mode vs. the raw-weight f32 reference
    fwd_f32 = jax.jit(lambda inp: csnet_st_forward(params, inp, mxu_dtype=jnp.float32))
    out_f32 = jax.block_until_ready(fwd_f32(x))
    assert out_f32.shape == (B, 4), out_f32.shape
    assert np.all(np.isfinite(np.asarray(out_f32)))
    np.testing.assert_allclose(np.asarray(out_f32), np.asarray(ref), rtol=1e-2, atol=1e-2)

    # production path: bf16 MXU operands with f32 accumulation.  The 16x16
    # Cholesky mildly amplifies the bf16 rounding of the gram, so only a loose
    # sanity comparison against the f32 reference is asserted here.
    fwd_bf16 = jax.jit(lambda inp: csnet_st_forward(params, inp, mxu_dtype=jnp.bfloat16))
    out_bf16 = jax.block_until_ready(fwd_bf16(x))
    assert out_bf16.shape == (B, 4), out_bf16.shape
    assert np.all(np.isfinite(np.asarray(out_bf16)))
    np.testing.assert_allclose(np.asarray(out_bf16), np.asarray(ref), rtol=2e-1, atol=2e-1)

    print("KERNEL_OK")
</pallas_src>

<mosaic_0001>
module attributes {stable_mosaic.version = 11 : i64} {
  func.func @_fused_feature_kernel(%arg0: i32, %arg1: memref<1x4x32xf32, #tpu.memory_space<vmem>>, %arg2: memref<16x4xf32, #tpu.memory_space<vmem>>, %arg3: memref<16x1xf32, #tpu.memory_space<vmem>>, %arg4: memref<16x6xf32, #tpu.memory_space<vmem>>, %arg5: memref<1x1x256xf32, #tpu.memory_space<vmem>>, %arg6: memref<1x16x36xf32, #tpu.memory_space<vmem>>) attributes {dimension_semantics = [#tpu.dimension_semantics<parallel>], iteration_bounds = array<i64: 2>, scalar_prefetch = 0 : i64, scratch_operands = 1 : i64, tpu.core_type = #tpu.core_type<tc>, window_params = [{transform_indices = @transform_0, window_bounds = array<i64: 1, 4, 32>}, {pipeline_mode = #tpu.pipeline_mode<synchronous>, transform_indices = @transform_1, window_bounds = array<i64: 16, 4>}, {pipeline_mode = #tpu.pipeline_mode<synchronous>, transform_indices = @transform_2, window_bounds = array<i64: 16, 1>}, {pipeline_mode = #tpu.pipeline_mode<synchronous>, transform_indices = @transform_3, window_bounds = array<i64: 16, 6>}, {transform_indices = @transform_4, window_bounds = array<i64: 1, 1, 256>}]} {
    %c0 = arith.constant 0 : index
    %c0_0 = arith.constant 0 : index
    %c0_1 = arith.constant 0 : index
    %0 = vector.load %arg1[%c0, %c0_0, %c0_1] : memref<1x4x32xf32, #tpu.memory_space<vmem>>, vector<1x4x32xf32>
    %c0_2 = arith.constant 0 : index
    %c0_3 = arith.constant 0 : index
    %1 = vector.load %arg2[%c0_2, %c0_3] : memref<16x4xf32, #tpu.memory_space<vmem>>, vector<16x4xf32>
    %2 = vector.shape_cast %1 : vector<16x4xf32> to vector<1x16x4xf32>
    "tpu.trace_start"() <{level = 10 : i32, message = "bdc,bct->bdt"}> : () -> ()
    %cst = arith.constant dense<0.000000e+00> : vector<1x16x32xf32>
    %3 = tpu.matmul %2, %0, %cst {dimension_numbers = #tpu.dot_dimension_numbers<[2], [1], [1], [2], [0, 0, 0, 1, 1, 2], [0], [0]>} : vector<1x16x4xf32>, vector<1x4x32xf32>, vector<1x16x32xf32> -> vector<1x16x32xf32>
    "tpu.trace_stop"() : () -> ()
    %c0_4 = arith.constant 0 : index
    %c0_5 = arith.constant 0 : index
    %4 = vector.load %arg3[%c0_4, %c0_5] : memref<16x1xf32, #tpu.memory_space<vmem>>, vector<16x1xf32>
    %5 = vector.shape_cast %4 : vector<16x1xf32> to vector<1x16x1xf32>
    %6 = vector.broadcast %5 : vector<1x16x1xf32> to vector<1x16x32xf32>
    %7 = arith.addf %3, %6 : vector<1x16x32xf32>
    %cst_6 = arith.constant 0.000000e+00 : f32
    %8 = vector.broadcast %cst_6 : f32 to vector<1x16x2xf32>
    %c0_7 = arith.constant 0 : index
    %c0_8 = arith.constant 0 : index
    %c0_9 = arith.constant 0 : index
    %9 = vector.load %arg6[%c0_7, %c0_8, %c0_9] : memref<1x16x36xf32, #tpu.memory_space<vmem>>, vector<1x16x2xf32>
    tpu.vector_store %arg6[%c0_7, %c0_8, %c0_9], %8 {strides = array<i32>} : memref<1x16x36xf32, #tpu.memory_space<vmem>>, vector<1x16x2xf32>,
    %c0_10 = arith.constant 0 : index
    %c0_11 = arith.constant 0 : index
    %c34 = arith.constant 34 : index
    %10 = vector.load %arg6[%c0_10, %c0_11, %c34] : memref<1x16x36xf32, #tpu.memory_space<vmem>>, vector<1x16x2xf32>
    tpu.vector_store %arg6[%c0_10, %c0_11, %c34], %8 {strides = array<i32>} : memref<1x16x36xf32, #tpu.memory_space<vmem>>, vector<1x16x2xf32>,
    %c0_12 = arith.constant 0 : index
    %c0_13 = arith.constant 0 : index
    %c2 = arith.constant 2 : index
    %11 = vector.load %arg6[%c0_12, %c0_13, %c2] : memref<1x16x36xf32, #tpu.memory_space<vmem>>, vector<1x16x32xf32>
    tpu.vector_store %arg6[%c0_12, %c0_13, %c2], %7 {strides = array<i32>} : memref<1x16x36xf32, #tpu.memory_space<vmem>>, vector<1x16x32xf32>,
    %c0_14 = arith.constant 0 : index
    %c0_15 = arith.constant 0 : index
    %12 = vector.load %arg4[%c0_14, %c0_15] : memref<16x6xf32, #tpu.memory_space<vmem>>, vector<16x6xf32>
    %cst_16 = arith.constant 0.000000e+00 : f32
    %13 = vector.broadcast %cst_16 : f32 to vector<1x16x32xf32>
    %14 = vector.extract_strided_slice %12 {offsets = [0, 0], sizes = [16, 1], strides = [1, 1]} : vector<16x6xf32> to vector<16x1xf32>
    %c0_17 = arith.constant 0 : index
    %c0_18 = arith.constant 0 : index
    %c0_19 = arith.constant 0 : index
    %15 = vector.load %arg6[%c0_17, %c0_18, %c0_19] : memref<1x16x36xf32, #tpu.memory_space<vmem>>, vector<1x16x32xf32>
    %16 = vector.shape_cast %14 : vector<16x1xf32> to vector<1x16x1xf32>
    %17 = vector.broadcast %16 : vector<1x16x1xf32> to vector<1x16x32xf32>
    %18 = arith.mulf %17, %15 : vector<1x16x32xf32>
    %19 = arith.addf %13, %18 : vector<1x16x32xf32>
    %20 = vector.extract_strided_slice %12 {offsets = [0, 1], sizes = [16, 1], strides = [1, 1]} : vector<16x6xf32> to vector<16x1xf32>
    %c0_20 = arith.constant 0 : index
    %c0_21 = arith.constant 0 : index
    %c1 = arith.constant 1 : index
    %21 = vector.load %arg6[%c0_20, %c0_21, %c1] : memref<1x16x36xf32, #tpu.memory_space<vmem>>, vector<1x16x32xf32>
    %22 = vector.shape_cast %20 : vector<16x1xf32> to vector<1x16x1xf32>
    %23 = vector.broadcast %22 : vector<1x16x1xf32> to vector<1x16x32xf32>
    %24 = arith.mulf %23, %21 : vector<1x16x32xf32>
    %25 = arith.addf %19, %24 : vector<1x16x32xf32>
    %26 = vector.extract_strided_slice %12 {offsets = [0, 2], sizes = [16, 1], strides = [1, 1]} : vector<16x6xf32> to vector<16x1xf32>
    %c0_22 = arith.constant 0 : index
    %c0_23 = arith.constant 0 : index
    %c2_24 = arith.constant 2 : index
    %27 = vector.load %arg6[%c0_22, %c0_23, %c2_24] : memref<1x16x36xf32, #tpu.memory_space<vmem>>, vector<1x16x32xf32>
    %28 = vector.shape_cast %26 : vector<16x1xf32> to vector<1x16x1xf32>
    %29 = vector.broadcast %28 : vector<1x16x1xf32> to vector<1x16x32xf32>
    %30 = arith.mulf %29, %27 : vector<1x16x32xf32>
    %31 = arith.addf %25, %30 : vector<1x16x32xf32>
    %32 = vector.extract_strided_slice %12 {offsets = [0, 3], sizes = [16, 1], strides = [1, 1]} : vector<16x6xf32> to vector<16x1xf32>
    %c0_25 = arith.constant 0 : index
    %c0_26 = arith.constant 0 : index
    %c3 = arith.constant 3 : index
    %33 = vector.load %arg6[%c0_25, %c0_26, %c3] : memref<1x16x36xf32, #tpu.memory_space<vmem>>, vector<1x16x32xf32>
    %34 = vector.shape_cast %32 : vector<16x1xf32> to vector<1x16x1xf32>
    %35 = vector.broadcast %34 : vector<1x16x1xf32> to vector<1x16x32xf32>
    %36 = arith.mulf %35, %33 : vector<1x16x32xf32>
    %37 = arith.addf %31, %36 : vector<1x16x32xf32>
    %38 = vector.extract_strided_slice %12 {offsets = [0, 4], sizes = [16, 1], strides = [1, 1]} : vector<16x6xf32> to vector<16x1xf32>
    %c0_27 = arith.constant 0 : index
    %c0_28 = arith.constant 0 : index
    %c4 = arith.constant 4 : index
    %39 = vector.load %arg6[%c0_27, %c0_28, %c4] : memref<1x16x36xf32, #tpu.memory_space<vmem>>, vector<1x16x32xf32>
    %40 = vector.shape_cast %38 : vector<16x1xf32> to vector<1x16x1xf32>
    %41 = vector.broadcast %40 : vector<1x16x1xf32> to vector<1x16x32xf32>
    %42 = arith.mulf %41, %39 : vector<1x16x32xf32>
    %43 = arith.addf %37, %42 : vector<1x16x32xf32>
    %44 = vector.extract_strided_slice %12 {offsets = [0, 5], sizes = [16, 1], strides = [1, 1]} : vector<16x6xf32> to vector<16x1xf32>
    %45 = vector.shape_cast %44 : vector<16x1xf32> to vector<1x16x1xf32>
    %46 = vector.broadcast %45 : vector<1x16x1xf32> to vector<1x16x32xf32>
    %47 = arith.addf %43, %46 : vector<1x16x32xf32>
    %cst_29 = arith.constant dense<0.000000e+00> : vector<1x16x16xf32>
    %48 = tpu.matmul %47, %47, %cst_29 {dimension_numbers = #tpu.dot_dimension_numbers<[2], [2], [1], [1], [0, 0, 0, 1, 1, 1], [0], [0]>} : vector<1x16x32xf32>, vector<1x16x32xf32>, vector<1x16x16xf32> -> vector<1x16x16xf32>
    %49 = vector.extract_strided_slice %48 {offsets = [0, 0, 0], sizes = [1, 1, 16], strides = [1, 1, 1]} : vector<1x16x16xf32> to vector<1x1x16xf32>
    %50 = vector.extract_strided_slice %48 {offsets = [0, 1, 0], sizes = [1, 1, 16], strides = [1, 1, 1]} : vector<1x16x16xf32> to vector<1x1x16xf32>
    %51 = vector.extract_strided_slice %48 {offsets = [0, 2, 0], sizes = [1, 1, 16], strides = [1, 1, 1]} : vector<1x16x16xf32> to vector<1x1x16xf32>
    %52 = vector.extract_strided_slice %48 {offsets = [0, 3, 0], sizes = [1, 1, 16], strides = [1, 1, 1]} : vector<1x16x16xf32> to vector<1x1x16xf32>
    %53 = vector.extract_strided_slice %48 {offsets = [0, 4, 0], sizes = [1, 1, 16], strides = [1, 1, 1]} : vector<1x16x16xf32> to vector<1x1x16xf32>
    %54 = vector.extract_strided_slice %48 {offsets = [0, 5, 0], sizes = [1, 1, 16], strides = [1, 1, 1]} : vector<1x16x16xf32> to vector<1x1x16xf32>
    %55 = vector.extract_strided_slice %48 {offsets = [0, 6, 0], sizes = [1, 1, 16], strides = [1, 1, 1]} : vector<1x16x16xf32> to vector<1x1x16xf32>
    %56 = vector.extract_strided_slice %48 {offsets = [0, 7, 0], sizes = [1, 1, 16], strides = [1, 1, 1]} : vector<1x16x16xf32> to vector<1x1x16xf32>
    %57 = vector.extract_strided_slice %48 {offsets = [0, 8, 0], sizes = [1, 1, 16], strides = [1, 1, 1]} : vector<1x16x16xf32> to vector<1x1x16xf32>
    %58 = vector.extract_strided_slice %48 {offsets = [0, 9, 0], sizes = [1, 1, 16], strides = [1, 1, 1]} : vector<1x16x16xf32> to vector<1x1x16xf32>
    %59 = vector.extract_strided_slice %48 {offsets = [0, 10, 0], sizes = [1, 1, 16], strides = [1, 1, 1]} : vector<1x16x16xf32> to vector<1x1x16xf32>
    %60 = vector.extract_strided_slice %48 {offsets = [0, 11, 0], sizes = [1, 1, 16], strides = [1, 1, 1]} : vector<1x16x16xf32> to vector<1x1x16xf32>
    %61 = vector.extract_strided_slice %48 {offsets = [0, 12, 0], sizes = [1, 1, 16], strides = [1, 1, 1]} : vector<1x16x16xf32> to vector<1x1x16xf32>
    %62 = vector.extract_strided_slice %48 {offsets = [0, 13, 0], sizes = [1, 1, 16], strides = [1, 1, 1]} : vector<1x16x16xf32> to vector<1x1x16xf32>
    %63 = vector.extract_strided_slice %48 {offsets = [0, 14, 0], sizes = [1, 1, 16], strides = [1, 1, 1]} : vector<1x16x16xf32> to vector<1x1x16xf32>
    %64 = vector.extract_strided_slice %48 {offsets = [0, 15, 0], sizes = [1, 1, 16], strides = [1, 1, 1]} : vector<1x16x16xf32> to vector<1x1x16xf32>
    %65 = tpu.concatenate %49, %50, %51, %52, %53, %54, %55, %56, %57, %58, %59, %60, %61, %62, %63, %64 in 2 : vector<1x1x16xf32>, vector<1x1x16xf32>, vector<1x1x16xf32>, vector<1x1x16xf32>, vector<1x1x16xf32>, vector<1x1x16xf32>, vector<1x1x16xf32>, vector<1x1x16xf32>, vector<1x1x16xf32>, vector<1x1x16xf32>, vector<1x1x16xf32>, vector<1x1x16xf32>, vector<1x1x16xf32>, vector<1x1x16xf32>, vector<1x1x16xf32>, vector<1x1x16xf32> -> vector<1x1x256xf32>
    %c0_30 = arith.constant 0 : index
    %c0_31 = arith.constant 0 : index
    %c0_32 = arith.constant 0 : index
    %66 = vector.load %arg5[%c0_30, %c0_31, %c0_32] : memref<1x1x256xf32, #tpu.memory_space<vmem>>, vector<1x1x256xf32>
    tpu.vector_store %arg5[%c0_30, %c0_31, %c0_32], %65 {strides = array<i32>} : memref<1x1x256xf32, #tpu.memory_space<vmem>>, vector<1x1x256xf32>,
    return
  }
  func.func @transform_0(%arg0: i32) -> (i32, i32, i32) {
    %c0_i32 = arith.constant 0 : i32
    %c0_i32_0 = arith.constant 0 : i32
    %c0_i32_1 = arith.constant 0 : i32
    return %arg0, %c0_i32, %c0_i32_0 : i32, i32, i32
  }
  func.func @transform_1(%arg0: i32) -> (i32, i32) {
    %c0_i32 = arith.constant 0 : i32
    %c0_i32_0 = arith.constant 0 : i32
    %c0_i32_1 = arith.constant 0 : i32
    return %c0_i32, %c0_i32_0 : i32, i32
  }
  func.func @transform_2(%arg0: i32) -> (i32, i32) {
    %c0_i32 = arith.constant 0 : i32
    %c0_i32_0 = arith.constant 0 : i32
    %c0_i32_1 = arith.constant 0 : i32
    return %c0_i32, %c0_i32_0 : i32, i32
  }
  func.func @transform_3(%arg0: i32) -> (i32, i32) {
    %c0_i32 = arith.constant 0 : i32
    %c0_i32_0 = arith.constant 0 : i32
    %c0_i32_1 = arith.constant 0 : i32
    return %c0_i32, %c0_i32_0 : i32, i32
  }
  func.func @transform_4(%arg0: i32) -> (i32, i32, i32) {
    %c0_i32 = arith.constant 0 : i32
    %c0_i32_0 = arith.constant 0 : i32
    %c0_i32_1 = arith.constant 0 : i32
    return %arg0, %c0_i32, %c0_i32_0 : i32, i32, i32
  }
}

</mosaic_0001>

<llo_original>
// kernel: custom-call.8
$region0: #{custom-call.8}
  %s0 = inlined_call_operand.vmem [shape: f32[2,16,16], index: 0, kind: input, shape index: {}]
  %s1 = inlined_call_operand.vmem [shape: f32[2,16,16], index: 1, kind: output, shape index: {}]
  $region1: #{custom-call.8} parent=0
    #allocation0 [shape = 'u8[16384]{0}', space=vmem, size = 0x4000, scoped, tag = 'operand span for operand 0']
    #allocation1 [shape = 'u8[16384]{0}', space=vmem, size = 0x4000, scoped, tag = 'operand span for operand 1']
    loop: start=0, step=1, limit=4
    $region2: #{custom-call.8} parent=1 // loop_pre_header
      _
    $region3: #{custom-call.8} parent=1 // loop_header
      %s3 = sphi 0, %s7
      %p4 = scmp.ge.s32.totalorder %s3, 4
      %s10 = sphi 0, %s29
      %s11 = sphi 0, %s25
      %s12 = sphi 0, %s21
      %s13 = sphi 0, %s10
      %s14 = sphi 0, %s11
      %s15 = sphi 0, %s12
      %s16 = sphi 0, %s13
      %s17 = sphi 0, %s14
      %s18 = sphi 0, %s15
    $region4: #{custom-call.8} parent=1 // loop_header_branch
      %6 = sbr.rel (%p4) target = $region8
    $region5: #{custom-call.8} parent=1 // loop_body
      %s8 = ssub.s32 %s3, 1
      %s9 = ssub.s32 %s3, 2
      %s19 = sadd.s32 1, %s12
      %p20 = scmp.ge.s32.totalorder %s19, 1
      %s21 = scalar_select %p20, 0, %s19
      %s22 = sadd.s32 1, %s11
      %s23 = scalar_select %p20, %s22, %s11
      %p24 = scmp.ge.s32.totalorder %s23, 1
      %s25 = scalar_select %p24, 0, %s23
      %s26 = sadd.s32 1, %s10
      %s27 = scalar_select %p24, %s26, %s10
      %p28 = scmp.ge.s32.totalorder %s27, 2
      %s29 = scalar_select %p28, 0, %s27
      %p30 = scmp.le.s32.totalorder 1, %s3
      %p31 = scmp.lt.s32.totalorder %s3, 3
      %p32 = pnand %p30, %p31
      %p33 = pneg %p32
      // Predicated region
      $region9: #{custom-call.8} parent=5 // pred_check
        _
      $region10: #{custom-call.8} parent=5 // pred_check_branch
        %35 = sbr.rel (%p32) target = $region12
      $region11: #{custom-call.8} parent=5 // pred_region
        %s36 = ssub.s32 %s3, 1
      $region12: #{custom-call.8} parent=5 // pred_fallthru
        _
      %p37 = scmp.lt.s32.totalorder %s3, 2
      // Predicated region
      $region13: #{custom-call.8} parent=5 // pred_check
        %p38 = pneg %p37
      $region14: #{custom-call.8} parent=5 // pred_check_branch
        %40 = sbr.rel (%p38) target = $region16
      $region15: #{custom-call.8} parent=5 // pred_region
        %s41 = sand.u32 %s3, 1
        %s42 = sand.u32 %s3, 1
        %s43 = smul.addr %s42, 16
        %s44 = scalar_lea.vmem [#allocation0], %s43
        %s45 = sadd.s32 %s12, %s11
        %s46 = smul.addr %s10, 2
        %s47 = sadd.s32 %s45, %s46
        %s48 = smul.addr %s47, 8
        %s49 = scalar_lea.vmem %s0, %s48
        // Predicated region
        $region17: #{custom-call.8} parent=15 // pred_check
          _
        $region18: #{custom-call.8} parent=15 // pred_check_branch
          %51 = sbr.rel (0) target = $region20
        $region19: #{custom-call.8} parent=15 // pred_region
          // Predicated region
          $region21: #{custom-call.8} parent=19 // pred_check
            _
          $region22: #{custom-call.8} parent=19 // pred_check_branch
            %53 = sbr.rel (0) target = $region24
          $region23: #{custom-call.8} parent=19 // pred_region
            // Predicated region
            $region36: #{custom-call.8} parent=23 // pred_check
              _
            $region37: #{custom-call.8} parent=23 // pred_check_branch
              %70 = sbr.rel (0) target = $region39
            $region38: #{custom-call.8} parent=23 // pred_region
              loop: start=0, step=1, limit=1
              $region40: #{custom-call.8} parent=38 // loop_pre_header
                _
              $region41: #{custom-call.8} parent=38 // loop_header
                %s72 = sphi 0, %s76
                %p73 = scmp.ge.s32.totalorder %s72, 1
                %s77 = sphi %s49, %s49
                %s78 = sphi %s44, %s44
              $region42: #{custom-call.8} parent=38 // loop_header_branch
                %75 = sbr.rel (%p73) target = $region46
              $region43: #{custom-call.8} parent=38 // loop_body
                %v79 = vld [vmem:[%s77] sm:$0xff]
                %80 = vst [vmem:[%s78] sm:$0xff] %v79
                %v81 = vld [vmem:[%s77 + $0x8] sm:$0xff]
                %82 = vst [vmem:[%s78 + $0x8] sm:$0xff] %v81
              $region44: #{custom-call.8} parent=38 // loop_footer
                %s76 = sadd.s32 1, %s72
              $region45: #{custom-call.8} parent=38 // loop_footer_branch
                %71 = sbr.rel target = $region41
              $region46: #{custom-call.8} parent=38 // loop_exit
                _
            $region39: #{custom-call.8} parent=23 // pred_fallthru
              _
            // Predicated region
            $region47: #{custom-call.8} parent=23 // pred_check
              _
            $region48: #{custom-call.8} parent=23 // pred_check_branch
              %84 = sbr.rel target = $region50
            $region49: #{custom-call.8} parent=23 // pred_region
              _
            $region50: #{custom-call.8} parent=23 // pred_fallthru
              _
          $region24: #{custom-call.8} parent=19 // pred_fallthru
            _
          // Predicated region
          $region25: #{custom-call.8} parent=19 // pred_check
            _
          $region26: #{custom-call.8} parent=19 // pred_check_branch
            %55 = sbr.rel target = $region28
          $region27: #{custom-call.8} parent=19 // pred_region
            loop: start=0, step=1, limit=1
            $region29: #{custom-call.8} parent=27 // loop_pre_header
              _
            $region30: #{custom-call.8} parent=27 // loop_header
              %s58 = sphi 0, %s62
              %p59 = scmp.ge.s32.totalorder %s58, 1
              %s63 = sphi %s49, %s49
              %s64 = sphi %s44, %s44
            $region31: #{custom-call.8} parent=27 // loop_header_branch
              %61 = sbr.rel (%p59) target = $region35
            $region32: #{custom-call.8} parent=27 // loop_body
              %v65 = vld [vmem:[%s63] sm:$0xff]
              %66 = vst [vmem:[%s64] sm:$0xff] %v65
              %v67 = vld [vmem:[%s63 + $0x8] sm:$0xff]
              %68 = vst [vmem:[%s64 + $0x8] sm:$0xff] %v67
            $region33: #{custom-call.8} parent=27 // loop_footer
              %s62 = sadd.s32 1, %s58
            $region34: #{custom-call.8} parent=27 // loop_footer_branch
              %57 = sbr.rel target = $region30
            $region35: #{custom-call.8} parent=27 // loop_exit
              _
          $region28: #{custom-call.8} parent=19 // pred_fallthru
            _
        $region20: #{custom-call.8} parent=15 // pred_fallthru
          _
        %85 = vnop
      $region16: #{custom-call.8} parent=5 // pred_fallthru
        _
      %p86 = scmp.le.s32.totalorder 1, %s3
      %p87 = scmp.lt.s32.totalorder %s3, 3
      %p88 = pnand %p86, %p87
      %p89 = pneg %p88
      // Predicated region
      $region51: #{custom-call.8} parent=5 // pred_check
        _
      $region52: #{custom-call.8} parent=5 // pred_check_branch
        %91 = sbr.rel (%p88) target = $region54
      $region53: #{custom-call.8} parent=5 // pred_region
        %s92 = ssub.s32 %s3, 1
        %s93 = sand.u32 %s8, 1
        %s94 = sand.u32 %s8, 1
        %s95 = smul.addr %s94, 16
        %s96 = scalar_lea.vmem [#allocation0], %s95
        %s97 = sand.u32 %s8, 1
        %s98 = sand.u32 %s8, 1
        %s99 = smul.addr %s98, 16
        %s100 = scalar_lea.vmem [#allocation0], %s99
        %s101 = sand.u32 %s8, 1
        %s102 = sand.u32 %s8, 1
        %s103 = smul.addr %s102, 16
        %s104 = scalar_lea.vmem [#allocation1], %s103
        %105 = vst [vmem:[%s104] sm:$0xff] 0.0
        %s106 = scalar_lea.vmem %s104, 8 [#allocation1]
        %107 = vst [vmem:[%s106] sm:$0xff] 0.0
        %vm108 = vcmask 7168
        %v109 = vld [vmem:[%s104] ss:$0 sm:$0xff]
        %v110 = vld [vmem:[%s96] ss:$0 sm:$0xff]
        %v111 = vmul.f32 %v109, %v109
        %112 = vadd.xlane.f32.xlu0 %v111
        %v113 = vpop.xlane.xlu0 %112
        %v114 = vsub.f32 %v110, %v113
        %v115 = vrsqrt.pop %v114
        %v116 = vld [vmem:[%s96] sm:$0xff]
        %v117 = vld [vmem:[%s104] sm:$0xff]
        %v118 = vmul.f32 %v117, %v109
        %119 = vadd.xlane.f32.xlu0 %v118
        %v120 = vpop.xlane.xlu0 %119
        %v121 = vsub.f32 %v116, %v120
        %v122 = vmul.f32 %v121, %v115
        %v123 = vsel %vm108, %v122, 0.0
        %v124 = vadd.f32 %v117, %v123
        %125 = vst [vmem:[%s104] sm:$0xff] %v124
        %s126 = scalar_lea.vmem %s96, 8 [#allocation0]
        %v127 = vld [vmem:[%s126] sm:$0xff]
        %s128 = scalar_lea.vmem %s104, 8 [#allocation1]
        %v129 = vld [vmem:[%s128] sm:$0xff]
        %v130 = vmul.f32 %v129, %v109
        %131 = vadd.xlane.f32.xlu0 %v130
        %v132 = vpop.xlane.xlu0 %131
        %v133 = vsub.f32 %v127, %v132
        %v134 = vmul.f32 %v133, %v115
        %v135 = vsel %vm108, %v134, 0.0
        %v136 = vadd.f32 %v129, %v135
        %s137 = scalar_lea.vmem %s104, 8 [#allocation1]
        %138 = vst [vmem:[%s137] sm:$0xff] %v136
        %vm139 = vcmask 15368
        %s140 = scalar_lea.vmem %s104, 1 [#allocation1]
        %v141 = vld [vmem:[%s140] ss:$0 sm:$0xff]
        %s142 = scalar_lea.vmem %s96, 1 [#allocation0]
        %v143 = vld [vmem:[%s142] ss:$0 sm:$0xff]
        %v144 = vmul.f32 %v141, %v141
        %145 = vadd.xlane.f32.xlu0 %v144
        %v146 = vpop.xlane.xlu0 %145
        %v147 = vsub.f32 %v143, %v146
        %v148 = vrsqrt.pop %v147
        %v149 = vld [vmem:[%s96] sm:$0xff]
        %v150 = vld [vmem:[%s104] sm:$0xff]
        %v151 = vmul.f32 %v150, %v141
        %152 = vadd.xlane.f32.xlu0 %v151
        %v153 = vpop.xlane.xlu0 %152
        %v154 = vsub.f32 %v149, %v153
        %v155 = vmul.f32 %v154, %v148
        %vm156 = vcmask 1047553
        %vm157 = vmand %vm139, %vm156
        %v158 = vsel %vm157, %v155, 0.0
        %v159 = vadd.f32 %v150, %v158
        %160 = vst [vmem:[%s104] sm:$0xff] %v159
        %s161 = scalar_lea.vmem %s96, 8 [#allocation0]
        %v162 = vld [vmem:[%s161] sm:$0xff]
        %s163 = scalar_lea.vmem %s104, 8 [#allocation1]
        %v164 = vld [vmem:[%s163] sm:$0xff]
        %v165 = vmul.f32 %v164, %v141
        %166 = vadd.xlane.f32.xlu0 %v165
        %v167 = vpop.xlane.xlu0 %166
        %v168 = vsub.f32 %v162, %v167
        %v169 = vmul.f32 %v168, %v148
        %v170 = vsel %vm139, %v169, 0.0
        %v171 = vadd.f32 %v164, %v170
        %s172 = scalar_lea.vmem %s104, 8 [#allocation1]
        %173 = vst [vmem:[%s172] sm:$0xff] %v171
        %vm174 = vcmask 23568
        %s175 = scalar_lea.vmem %s104, 2 [#allocation1]
        %v176 = vld [vmem:[%s175] ss:$0 sm:$0xff]
        %s177 = scalar_lea.vmem %s96, 2 [#allocation0]
        %v178 = vld [vmem:[%s177] ss:$0 sm:$0xff]
        %v179 = vmul.f32 %v176, %v176
        %180 = vadd.xlane.f32.xlu0 %v179
        %v181 = vpop.xlane.xlu0 %180
        %v182 = vsub.f32 %v178, %v181
        %v183 = vrsqrt.pop %v182
        %v184 = vld [vmem:[%s96] sm:$0xff]
        %v185 = vld [vmem:[%s104] sm:$0xff]
        %v186 = vmul.f32 %v185, %v176
        %187 = vadd.xlane.f32.xlu0 %v186
        %v188 = vpop.xlane.xlu0 %187
        %v189 = vsub.f32 %v184, %v188
        %v190 = vmul.f32 %v189, %v183
        %vm191 = vcmask 1047554
        %vm192 = vmand %vm174, %vm191
        %v193 = vsel %vm192, %v190, 0.0
        %v194 = vadd.f32 %v185, %v193
        %195 = vst [vmem:[%s104] sm:$0xff] %v194
        %s196 = scalar_lea.vmem %s96, 8 [#allocation0]
        %v197 = vld [vmem:[%s196] sm:$0xff]
        %s198 = scalar_lea.vmem %s104, 8 [#allocation1]
        %v199 = vld [vmem:[%s198] sm:$0xff]
        %v200 = vmul.f32 %v199, %v176
        %201 = vadd.xlane.f32.xlu0 %v200
        %v202 = vpop.xlane.xlu0 %201
        %v203 = vsub.f32 %v197, %v202
        %v204 = vmul.f32 %v203, %v183
        %v205 = vsel %vm174, %v204, 0.0
        %v206 = vadd.f32 %v199, %v205
        %s207 = scalar_lea.vmem %s104, 8 [#allocation1]
        %208 = vst [vmem:[%s207] sm:$0xff] %v206
        %vm209 = vcmask 31768
        %s210 = scalar_lea.vmem %s104, 3 [#allocation1]
        %v211 = vld [vmem:[%s210] ss:$0 sm:$0xff]
        %s212 = scalar_lea.vmem %s96, 3 [#allocation0]
        %v213 = vld [vmem:[%s212] ss:$0 sm:$0xff]
        %v214 = vmul.f32 %v211, %v211
        %215 = vadd.xlane.f32.xlu0 %v214
        %v216 = vpop.xlane.xlu0 %215
        %v217 = vsub.f32 %v213, %v216
        %v218 = vrsqrt.pop %v217
        %v219 = vld [vmem:[%s96] sm:$0xff]
        %v220 = vld [vmem:[%s104] sm:$0xff]
        %v221 = vmul.f32 %v220, %v211
        %222 = vadd.xlane.f32.xlu0 %v221
        %v223 = vpop.xlane.xlu0 %222
        %v224 = vsub.f32 %v219, %v223
        %v225 = vmul.f32 %v224, %v218
        %vm226 = vcmask 1047555
        %vm227 = vmand %vm209, %vm226
        %v228 = vsel %vm227, %v225, 0.0
        %v229 = vadd.f32 %v220, %v228
        %230 = vst [vmem:[%s104] sm:$0xff] %v229
        %s231 = scalar_lea.vmem %s96, 8 [#allocation0]
        %v232 = vld [vmem:[%s231] sm:$0xff]
        %s233 = scalar_lea.vmem %s104, 8 [#allocation1]
        %v234 = vld [vmem:[%s233] sm:$0xff]
        %v235 = vmul.f32 %v234, %v211
        %236 = vadd.xlane.f32.xlu0 %v235
        %v237 = vpop.xlane.xlu0 %236
        %v238 = vsub.f32 %v232, %v237
        %v239 = vmul.f32 %v238, %v218
        %v240 = vsel %vm209, %v239, 0.0
        %v241 = vadd.f32 %v234, %v240
        %s242 = scalar_lea.vmem %s104, 8 [#allocation1]
        %243 = vst [vmem:[%s242] sm:$0xff] %v241
        %vm244 = vcmask 39968
        %s245 = scalar_lea.vmem %s104, 4 [#allocation1]
        %v246 = vld [vmem:[%s245] ss:$0 sm:$0xff]
        %s247 = scalar_lea.vmem %s96, 4 [#allocation0]
        %v248 = vld [vmem:[%s247] ss:$0 sm:$0xff]
        %v249 = vmul.f32 %v246, %v246
        %250 = vadd.xlane.f32.xlu0 %v249
        %v251 = vpop.xlane.xlu0 %250
        %v252 = vsub.f32 %v248, %v251
        %v253 = vrsqrt.pop %v252
        %v254 = vld [vmem:[%s96] sm:$0xff]
        %v255 = vld [vmem:[%s104] sm:$0xff]
        %v256 = vmul.f32 %v255, %v246
        %257 = vadd.xlane.f32.xlu0 %v256
        %v258 = vpop.xlane.xlu0 %257
        %v259 = vsub.f32 %v254, %v258
        %v260 = vmul.f32 %v259, %v253
        %vm261 = vcmask 1047556
        %vm262 = vmand %vm244, %vm261
        %v263 = vsel %vm262, %v260, 0.0
        %v264 = vadd.f32 %v255, %v263
        %265 = vst [vmem:[%s104] sm:$0xff] %v264
        %s266 = scalar_lea.vmem %s96, 8 [#allocation0]
        %v267 = vld [vmem:[%s266] sm:$0xff]
        %s268 = scalar_lea.vmem %s104, 8 [#allocation1]
        %v269 = vld [vmem:[%s268] sm:$0xff]
        %v270 = vmul.f32 %v269, %v246
        %271 = vadd.xlane.f32.xlu0 %v270
        %v272 = vpop.xlane.xlu0 %271
        %v273 = vsub.f32 %v267, %v272
        %v274 = vmul.f32 %v273, %v253
        %v275 = vsel %vm244, %v274, 0.0
        %v276 = vadd.f32 %v269, %v275
        %s277 = scalar_lea.vmem %s104, 8 [#allocation1]
        %278 = vst [vmem:[%s277] sm:$0xff] %v276
        %vm279 = vcmask 48168
        %s280 = scalar_lea.vmem %s104, 5 [#allocation1]
        %v281 = vld [vmem:[%s280] ss:$0 sm:$0xff]
        %s282 = scalar_lea.vmem %s96, 5 [#allocation0]
        %v283 = vld [vmem:[%s282] ss:$0 sm:$0xff]
        %v284 = vmul.f32 %v281, %v281
        %285 = vadd.xlane.f32.xlu0 %v284
        %v286 = vpop.xlane.xlu0 %285
        %v287 = vsub.f32 %v283, %v286
        %v288 = vrsqrt.pop %v287
        %v289 = vld [vmem:[%s96] sm:$0xff]
        %v290 = vld [vmem:[%s104] sm:$0xff]
        %v291 = vmul.f32 %v290, %v281
        %292 = vadd.xlane.f32.xlu0 %v291
        %v293 = vpop.xlane.xlu0 %292
        %v294 = vsub.f32 %v289, %v293
        %v295 = vmul.f32 %v294, %v288
        %vm296 = vcmask 1047557
        %vm297 = vmand %vm279, %vm296
        %v298 = vsel %vm297, %v295, 0.0
        %v299 = vadd.f32 %v290, %v298
        %300 = vst [vmem:[%s104] sm:$0xff] %v299
        %s301 = scalar_lea.vmem %s96, 8 [#allocation0]
        %v302 = vld [vmem:[%s301] sm:$0xff]
        %s303 = scalar_lea.vmem %s104, 8 [#allocation1]
        %v304 = vld [vmem:[%s303] sm:$0xff]
        %v305 = vmul.f32 %v304, %v281
        %306 = vadd.xlane.f32.xlu0 %v305
        %v307 = vpop.xlane.xlu0 %306
        %v308 = vsub.f32 %v302, %v307
        %v309 = vmul.f32 %v308, %v288
        %v310 = vsel %vm279, %v309, 0.0
        %v311 = vadd.f32 %v304, %v310
        %s312 = scalar_lea.vmem %s104, 8 [#allocation1]
        %313 = vst [vmem:[%s312] sm:$0xff] %v311
        %vm314 = vcmask 56368
        %s315 = scalar_lea.vmem %s104, 6 [#allocation1]
        %v316 = vld [vmem:[%s315] ss:$0 sm:$0xff]
        %s317 = scalar_lea.vmem %s96, 6 [#allocation0]
        %v318 = vld [vmem:[%s317] ss:$0 sm:$0xff]
        %v319 = vmul.f32 %v316, %v316
        %320 = vadd.xlane.f32.xlu0 %v319
        %v321 = vpop.xlane.xlu0 %320
        %v322 = vsub.f32 %v318, %v321
        %v323 = vrsqrt.pop %v322
        %v324 = vld [vmem:[%s96] sm:$0xff]
        %v325 = vld [vmem:[%s104] sm:$0xff]
        %v326 = vmul.f32 %v325, %v316
        %327 = vadd.xlane.f32.xlu0 %v326
        %v328 = vpop.xlane.xlu0 %327
        %v329 = vsub.f32 %v324, %v328
        %v330 = vmul.f32 %v329, %v323
        %vm331 = vcmask 1047558
        %vm332 = vmand %vm314, %vm331
        %v333 = vsel %vm332, %v330, 0.0
        %v334 = vadd.f32 %v325, %v333
        %335 = vst [vmem:[%s104] sm:$0xff] %v334
        %s336 = scalar_lea.vmem %s96, 8 [#allocation0]
        %v337 = vld [vmem:[%s336] sm:$0xff]
        %s338 = scalar_lea.vmem %s104, 8 [#allocation1]
        %v339 = vld [vmem:[%s338] sm:$0xff]
        %v340 = vmul.f32 %v339, %v316
        %341 = vadd.xlane.f32.xlu0 %v340
        %v342 = vpop.xlane.xlu0 %341
        %v343 = vsub.f32 %v337, %v342
        %v344 = vmul.f32 %v343, %v323
        %v345 = vsel %vm314, %v344, 0.0
        %v346 = vadd.f32 %v339, %v345
        %s347 = scalar_lea.vmem %s104, 8 [#allocation1]
        %348 = vst [vmem:[%s347] sm:$0xff] %v346
        %vm349 = vcmask 64568
        %s350 = scalar_lea.vmem %s104, 7 [#allocation1]
        %v351 = vld [vmem:[%s350] ss:$0 sm:$0xff]
        %s352 = scalar_lea.vmem %s96, 7 [#allocation0]
        %v353 = vld [vmem:[%s352] ss:$0 sm:$0xff]
        %v354 = vmul.f32 %v351, %v351
        %355 = vadd.xlane.f32.xlu0 %v354
        %v356 = vpop.xlane.xlu0 %355
        %v357 = vsub.f32 %v353, %v356
        %v358 = vrsqrt.pop %v357
        %v359 = vld [vmem:[%s96] sm:$0xff]
        %v360 = vld [vmem:[%s104] sm:$0xff]
        %v361 = vmul.f32 %v360, %v351
        %362 = vadd.xlane.f32.xlu0 %v361
        %v363 = vpop.xlane.xlu0 %362
        %v364 = vsub.f32 %v359, %v363
        %v365 = vmul.f32 %v364, %v358
        %vm366 = vcmask 1047559
        %vm367 = vmand %vm349, %vm366
        %v368 = vsel %vm367, %v365, 0.0
        %v369 = vadd.f32 %v360, %v368
        %370 = vst [vmem:[%s104] sm:$0xff] %v369
        %s371 = scalar_lea.vmem %s96, 8 [#allocation0]
        %v372 = vld [vmem:[%s371] sm:$0xff]
        %s373 = scalar_lea.vmem %s104, 8 [#allocation1]
        %v374 = vld [vmem:[%s373] sm:$0xff]
        %v375 = vmul.f32 %v374, %v351
        %376 = vadd.xlane.f32.xlu0 %v375
        %v377 = vpop.xlane.xlu0 %376
        %v378 = vsub.f32 %v372, %v377
        %v379 = vmul.f32 %v378, %v358
        %v380 = vsel %vm349, %v379, 0.0
        %v381 = vadd.f32 %v374, %v380
        %s382 = scalar_lea.vmem %s104, 8 [#allocation1]
        %383 = vst [vmem:[%s382] sm:$0xff] %v381
        %vm384 = vcmask 72768
        %s385 = scalar_lea.vmem %s104, 8 [#allocation1]
        %v386 = vld [vmem:[%s385] ss:$0 sm:$0xff]
        %s387 = scalar_lea.vmem %s96, 8 [#allocation0]
        %v388 = vld [vmem:[%s387] ss:$0 sm:$0xff]
        %v389 = vmul.f32 %v386, %v386
        %390 = vadd.xlane.f32.xlu0 %v389
        %v391 = vpop.xlane.xlu0 %390
        %v392 = vsub.f32 %v388, %v391
        %v393 = vrsqrt.pop %v392
        %s394 = scalar_lea.vmem %s96, 8 [#allocation0]
        %v395 = vld [vmem:[%s394] sm:$0xff]
        %s396 = scalar_lea.vmem %s104, 8 [#allocation1]
        %v397 = vld [vmem:[%s396] sm:$0xff]
        %v398 = vmul.f32 %v397, %v386
        %399 = vadd.xlane.f32.xlu0 %v398
        %v400 = vpop.xlane.xlu0 %399
        %v401 = vsub.f32 %v395, %v400
        %v402 = vmul.f32 %v401, %v393
        %v403 = vsel %vm384, %v402, 0.0
        %v404 = vadd.f32 %v397, %v403
        %s405 = scalar_lea.vmem %s104, 8 [#allocation1]
        %406 = vst [vmem:[%s405] sm:$0xff] %v404
        %vm407 = vcmask 80968
        %s408 = scalar_lea.vmem %s104, 9 [#allocation1]
        %v409 = vld [vmem:[%s408] ss:$0 sm:$0xff]
        %s410 = scalar_lea.vmem %s96, 9 [#allocation0]
        %v411 = vld [vmem:[%s410] ss:$0 sm:$0xff]
        %v412 = vmul.f32 %v409, %v409
        %413 = vadd.xlane.f32.xlu0 %v412
        %v414 = vpop.xlane.xlu0 %413
        %v415 = vsub.f32 %v411, %v414
        %v416 = vrsqrt.pop %v415
        %s417 = scalar_lea.vmem %s96, 8 [#allocation0]
        %v418 = vld [vmem:[%s417] sm:$0xff]
        %s419 = scalar_lea.vmem %s104, 8 [#allocation1]
        %v420 = vld [vmem:[%s419] sm:$0xff]
        %v421 = vmul.f32 %v420, %v409
        %422 = vadd.xlane.f32.xlu0 %v421
        %v423 = vpop.xlane.xlu0 %422
        %v424 = vsub.f32 %v418, %v423
        %v425 = vmul.f32 %v424, %v416
        %vm426 = vcmask 1047553
        %vm427 = vmand %vm407, %vm426
        %v428 = vsel %vm427, %v425, 0.0
        %v429 = vadd.f32 %v420, %v428
        %s430 = scalar_lea.vmem %s104, 8 [#allocation1]
        %431 = vst [vmem:[%s430] sm:$0xff] %v429
        %vm432 = vcmask 89168
        %s433 = scalar_lea.vmem %s104, 10 [#allocation1]
        %v434 = vld [vmem:[%s433] ss:$0 sm:$0xff]
        %s435 = scalar_lea.vmem %s96, 10 [#allocation0]
        %v436 = vld [vmem:[%s435] ss:$0 sm:$0xff]
        %v437 = vmul.f32 %v434, %v434
        %438 = vadd.xlane.f32.xlu0 %v437
        %v439 = vpop.xlane.xlu0 %438
        %v440 = vsub.f32 %v436, %v439
        %v441 = vrsqrt.pop %v440
        %s442 = scalar_lea.vmem %s96, 8 [#allocation0]
        %v443 = vld [vmem:[%s442] sm:$0xff]
        %s444 = scalar_lea.vmem %s104, 8 [#allocation1]
        %v445 = vld [vmem:[%s444] sm:$0xff]
        %v446 = vmul.f32 %v445, %v434
        %447 = vadd.xlane.f32.xlu0 %v446
        %v448 = vpop.xlane.xlu0 %447
        %v449 = vsub.f32 %v443, %v448
        %v450 = vmul.f32 %v449, %v441
        %vm451 = vcmask 1047554
        %vm452 = vmand %vm432, %vm451
        %v453 = vsel %vm452, %v450, 0.0
        %v454 = vadd.f32 %v445, %v453
        %s455 = scalar_lea.vmem %s104, 8 [#allocation1]
        %456 = vst [vmem:[%s455] sm:$0xff] %v454
        %vm457 = vcmask 97368
        %s458 = scalar_lea.vmem %s104, 11 [#allocation1]
        %v459 = vld [vmem:[%s458] ss:$0 sm:$0xff]
        %s460 = scalar_lea.vmem %s96, 11 [#allocation0]
        %v461 = vld [vmem:[%s460] ss:$0 sm:$0xff]
        %v462 = vmul.f32 %v459, %v459
        %463 = vadd.xlane.f32.xlu0 %v462
        %v464 = vpop.xlane.xlu0 %463
        %v465 = vsub.f32 %v461, %v464
        %v466 = vrsqrt.pop %v465
        %s467 = scalar_lea.vmem %s96, 8 [#allocation0]
        %v468 = vld [vmem:[%s467] sm:$0xff]
        %s469 = scalar_lea.vmem %s104, 8 [#allocation1]
        %v470 = vld [vmem:[%s469] sm:$0xff]
        %v471 = vmul.f32 %v470, %v459
        %472 = vadd.xlane.f32.xlu0 %v471
        %v473 = vpop.xlane.xlu0 %472
        %v474 = vsub.f32 %v468, %v473
        %v475 = vmul.f32 %v474, %v466
        %vm476 = vcmask 1047555
        %vm477 = vmand %vm457, %vm476
        %v478 = vsel %vm477, %v475, 0.0
        %v479 = vadd.f32 %v470, %v478
        %s480 = scalar_lea.vmem %s104, 8 [#allocation1]
        %481 = vst [vmem:[%s480] sm:$0xff] %v479
        %vm482 = vcmask 105568
        %s483 = scalar_lea.vmem %s104, 12 [#allocation1]
        %v484 = vld [vmem:[%s483] ss:$0 sm:$0xff]
        %s485 = scalar_lea.vmem %s96, 12 [#allocation0]
        %v486 = vld [vmem:[%s485] ss:$0 sm:$0xff]
        %v487 = vmul.f32 %v484, %v484
        %488 = vadd.xlane.f32.xlu0 %v487
        %v489 = vpop.xlane.xlu0 %488
        %v490 = vsub.f32 %v486, %v489
        %v491 = vrsqrt.pop %v490
        %s492 = scalar_lea.vmem %s96, 8 [#allocation0]
        %v493 = vld [vmem:[%s492] sm:$0xff]
        %s494 = scalar_lea.vmem %s104, 8 [#allocation1]
        %v495 = vld [vmem:[%s494] sm:$0xff]
        %v496 = vmul.f32 %v495, %v484
        %497 = vadd.xlane.f32.xlu0 %v496
        %v498 = vpop.xlane.xlu0 %497
        %v499 = vsub.f32 %v493, %v498
        %v500 = vmul.f32 %v499, %v491
        %vm501 = vcmask 1047556
        %vm502 = vmand %vm482, %vm501
        %v503 = vsel %vm502, %v500, 0.0
        %v504 = vadd.f32 %v495, %v503
        %s505 = scalar_lea.vmem %s104, 8 [#allocation1]
        %506 = vst [vmem:[%s505] sm:$0xff] %v504
        %vm507 = vcmask 113768
        %s508 = scalar_lea.vmem %s104, 13 [#allocation1]
        %v509 = vld [vmem:[%s508] ss:$0 sm:$0xff]
        %s510 = scalar_lea.vmem %s96, 13 [#allocation0]
        %v511 = vld [vmem:[%s510] ss:$0 sm:$0xff]
        %v512 = vmul.f32 %v509, %v509
        %513 = vadd.xlane.f32.xlu0 %v512
        %v514 = vpop.xlane.xlu0 %513
        %v515 = vsub.f32 %v511, %v514
        %v516 = vrsqrt.pop %v515
        %s517 = scalar_lea.vmem %s96, 8 [#allocation0]
        %v518 = vld [vmem:[%s517] sm:$0xff]
        %s519 = scalar_lea.vmem %s104, 8 [#allocation1]
        %v520 = vld [vmem:[%s519] sm:$0xff]
        %v521 = vmul.f32 %v520, %v509
        %522 = vadd.xlane.f32.xlu0 %v521
        %v523 = vpop.xlane.xlu0 %522
        %v524 = vsub.f32 %v518, %v523
        %v525 = vmul.f32 %v524, %v516
        %vm526 = vcmask 1047557
        %vm527 = vmand %vm507, %vm526
        %v528 = vsel %vm527, %v525, 0.0
        %v529 = vadd.f32 %v520, %v528
        %s530 = scalar_lea.vmem %s104, 8 [#allocation1]
        %531 = vst [vmem:[%s530] sm:$0xff] %v529
        %vm532 = vcmask 121968
        %s533 = scalar_lea.vmem %s104, 14 [#allocation1]
        %v534 = vld [vmem:[%s533] ss:$0 sm:$0xff]
        %s535 = scalar_lea.vmem %s96, 14 [#allocation0]
        %v536 = vld [vmem:[%s535] ss:$0 sm:$0xff]
        %v537 = vmul.f32 %v534, %v534
        %538 = vadd.xlane.f32.xlu0 %v537
        %v539 = vpop.xlane.xlu0 %538
        %v540 = vsub.f32 %v536, %v539
        %v541 = vrsqrt.pop %v540
        %s542 = scalar_lea.vmem %s96, 8 [#allocation0]
        %v543 = vld [vmem:[%s542] sm:$0xff]
        %s544 = scalar_lea.vmem %s104, 8 [#allocation1]
        %v545 = vld [vmem:[%s544] sm:$0xff]
        %v546 = vmul.f32 %v545, %v534
        %547 = vadd.xlane.f32.xlu0 %v546
        %v548 = vpop.xlane.xlu0 %547
        %v549 = vsub.f32 %v543, %v548
        %v550 = vmul.f32 %v549, %v541
        %vm551 = vcmask 1047558
        %vm552 = vmand %vm532, %vm551
        %v553 = vsel %vm552, %v550, 0.0
        %v554 = vadd.f32 %v545, %v553
        %s555 = scalar_lea.vmem %s104, 8 [#allocation1]
        %556 = vst [vmem:[%s555] sm:$0xff] %v554
        %vm557 = vcmask 130168
        %s558 = scalar_lea.vmem %s104, 15 [#allocation1]
        %v559 = vld [vmem:[%s558] ss:$0 sm:$0xff]
        %s560 = scalar_lea.vmem %s96, 15 [#allocation0]
        %v561 = vld [vmem:[%s560] ss:$0 sm:$0xff]
        %v562 = vmul.f32 %v559, %v559
        %563 = vadd.xlane.f32.xlu0 %v562
        %v564 = vpop.xlane.xlu0 %563
        %v565 = vsub.f32 %v561, %v564
        %v566 = vrsqrt.pop %v565
        %s567 = scalar_lea.vmem %s96, 8 [#allocation0]
        %v568 = vld [vmem:[%s567] sm:$0xff]
        %s569 = scalar_lea.vmem %s104, 8 [#allocation1]
        %v570 = vld [vmem:[%s569] sm:$0xff]
        %v571 = vmul.f32 %v570, %v559
        %572 = vadd.xlane.f32.xlu0 %v571
        %v573 = vpop.xlane.xlu0 %572
        %v574 = vsub.f32 %v568, %v573
        %v575 = vmul.f32 %v574, %v566
        %vm576 = vcmask 1047559
        %vm577 = vmand %vm557, %vm576
        %v578 = vsel %vm577, %v575, 0.0
        %v579 = vadd.f32 %v570, %v578
        %s580 = scalar_lea.vmem %s104, 8 [#allocation1]
        %581 = vst [vmem:[%s580] sm:$0xff] %v579
        %s582 = sand.u32 %s8, 1
        %s583 = sand.u32 %s8, 1
        %s584 = smul.addr %s583, 16
        %s585 = scalar_lea.vmem [#allocation1], %s584
        %s586 = sadd.s32 %s15, %s14
        %s587 = smul.addr %s13, 2
        %s588 = sadd.s32 %s586, %s587
        %s589 = smul.addr %s588, 8
        %s590 = scalar_lea.vmem %s1, %s589
        // Predicated region
        $region55: #{custom-call.8} parent=53 // pred_check
          _
        $region56: #{custom-call.8} parent=53 // pred_check_branch
          %592 = sbr.rel (0) target = $region58
        $region57: #{custom-call.8} parent=53 // pred_region
          // Predicated region
          $region59: #{custom-call.8} parent=57 // pred_check
            _
          $region60: #{custom-call.8} parent=57 // pred_check_branch
            %594 = sbr.rel (0) target = $region62
          $region61: #{custom-call.8} parent=57 // pred_region
            // Predicated region
            $region74: #{custom-call.8} parent=61 // pred_check
              _
            $region75: #{custom-call.8} parent=61 // pred_check_branch
              %611 = sbr.rel (0) target = $region77
            $region76: #{custom-call.8} parent=61 // pred_region
              loop: start=0, step=1, limit=1
              $region78: #{custom-call.8} parent=76 // loop_pre_header
                _
              $region79: #{custom-call.8} parent=76 // loop_header
                %s613 = sphi 0, %s617
                %p614 = scmp.ge.s32.totalorder %s613, 1
                %s618 = sphi %s585, %s585
                %s619 = sphi %s590, %s590
              $region80: #{custom-call.8} parent=76 // loop_header_branch
                %616 = sbr.rel (%p614) target = $region84
              $region81: #{custom-call.8} parent=76 // loop_body
                %v620 = vld [vmem:[%s618] sm:$0xff]
                %621 = vst [vmem:[%s619] sm:$0xff] %v620
                %v622 = vld [vmem:[%s618 + $0x8] sm:$0xff]
                %623 = vst [vmem:[%s619 + $0x8] sm:$0xff] %v622
              $region82: #{custom-call.8} parent=76 // loop_footer
                %s617 = sadd.s32 1, %s613
              $region83: #{custom-call.8} parent=76 // loop_footer_branch
                %612 = sbr.rel target = $region79
              $region84: #{custom-call.8} parent=76 // loop_exit
                _
            $region77: #{custom-call.8} parent=61 // pred_fallthru
              _
            // Predicated region
            $region85: #{custom-call.8} parent=61 // pred_check
              _
            $region86: #{custom-call.8} parent=61 // pred_check_branch
              %625 = sbr.rel target = $region88
            $region87: #{custom-call.8} parent=61 // pred_region
              _
            $region88: #{custom-call.8} parent=61 // pred_fallthru
              _
          $region62: #{custom-call.8} parent=57 // pred_fallthru
            _
          // Predicated region
          $region63: #{custom-call.8} parent=57 // pred_check
            _
          $region64: #{custom-call.8} parent=57 // pred_check_branch
            %596 = sbr.rel target = $region66
          $region65: #{custom-call.8} parent=57 // pred_region
            loop: start=0, step=1, limit=1
            $region67: #{custom-call.8} parent=65 // loop_pre_header
              _
            $region68: #{custom-call.8} parent=65 // loop_header
              %s599 = sphi 0, %s603
              %p600 = scmp.ge.s32.totalorder %s599, 1
              %s604 = sphi %s585, %s585
              %s605 = sphi %s590, %s590
            $region69: #{custom-call.8} parent=65 // loop_header_branch
              %602 = sbr.rel (%p600) target = $region73
            $region70: #{custom-call.8} parent=65 // loop_body
              %v606 = vld [vmem:[%s604] sm:$0xff]
              %607 = vst [vmem:[%s605] sm:$0xff] %v606
              %v608 = vld [vmem:[%s604 + $0x8] sm:$0xff]
              %609 = vst [vmem:[%s605 + $0x8] sm:$0xff] %v608
            $region71: #{custom-call.8} parent=65 // loop_footer
              %s603 = sadd.s32 1, %s599
            $region72: #{custom-call.8} parent=65 // loop_footer_branch
              %598 = sbr.rel target = $region68
            $region73: #{custom-call.8} parent=65 // loop_exit
              _
          $region66: #{custom-call.8} parent=57 // pred_fallthru
            _
        $region58: #{custom-call.8} parent=53 // pred_fallthru
          _
        %626 = vnop
      $region54: #{custom-call.8} parent=5 // pred_fallthru
        _
      %p627 = scmp.le.s32.totalorder 2, %s3
      // Predicated region
      $region89: #{custom-call.8} parent=5 // pred_check
        %p628 = pneg %p627
      $region90: #{custom-call.8} parent=5 // pred_check_branch
        %630 = sbr.rel (%p628) target = $region92
      $region91: #{custom-call.8} parent=5 // pred_region
        %s631 = ssub.s32 %s3, 2
        %s632 = sand.u32 %s9, 1
        %s633 = sand.u32 %s9, 1
        %s634 = smul.addr %s633, 16
        %s635 = scalar_lea.vmem [#allocation1], %s634
      $region92: #{custom-call.8} parent=5 // pred_fallthru
        _
    $region6: #{custom-call.8} parent=1 // loop_footer
      %s7 = sadd.s32 1, %s3
    $region7: #{custom-call.8} parent=1 // loop_footer_branch
      %2 = sbr.rel target = $region3
    $region8: #{custom-call.8} parent=1 // loop_exit
      _

// kernel: _lambda_.1
$region0: #{_lambda_.1}
  #allocation0 [shape = 'u32[]', space=smem, size = 0x4, offset = 0x4, fixed_abs, tag = 'smem constant byte address 0x4 - core index']
  #allocation1 [shape = 'u32[144,128]{1,0:T(1,128)}', space=vmem, size = 0x12000, scoped, tag = 'internal scratch']
  #allocation2 [shape = 'f32[1,16,36]{2,1,0:T(8,128)}', space=vmem, size = 0x2000, scoped, tag = 'scratch operand']
  %s0 = inlined_call_operand.hbm [shape: f32[2,4,32], index: 0, kind: input, shape index: {}]
  %s1 = inlined_call_operand.vmem [shape: f32[16,4], index: 1, kind: input, shape index: {}]
  %s2 = inlined_call_operand.vmem [shape: f32[16,1], index: 2, kind: input, shape index: {}]
  %s3 = inlined_call_operand.hbm [shape: f32[16,6], index: 3, kind: input, shape index: {}]
  %s4 = inlined_call_operand.vmem [shape: f32[2,1,256], index: 4, kind: output, shape index: {}]
  %s5 = sld [smem:[#allocation0]]
  $region57: #{_lambda_.1} parent=0
    _
  %s7 = ssub.s32 1, %s5
  %s8 = scalar_select 0, %s7, %s5
  $region1: #{_lambda_.1} parent=0
    #allocation3 [shape = 'u8[4096]{0}', space=vmem, size = 0x1000, scoped, tag = 'input window, operand 0']
    #allocation4 [shape = 's32[2]{0}', space=sflag, size = 0x8, scoped, tag = 'scoped memory for _lambda_.1']
    #allocation5 [shape = 'u8[8192]{0}', space=vmem, size = 0x2000, scoped, tag = 'input window, operand 3, single buffered']
    #allocation6 [shape = 's32[1]{0}', space=sflag, size = 0x4, scoped, tag = 'scoped memory for _lambda_.1']
    %9 = vsyncpa [#allocation4], 0
    %s10 = scalar_lea.sflag [#allocation4], 1
    %11 = vsyncpa %s10, 0
    %12 = vsyncpa [#allocation6], 0
    loop: start=0, step=1, limit=4
    $region2: #{_lambda_.1} parent=1 // loop_pre_header
      _
    $region3: #{_lambda_.1} parent=1 // loop_header
      %s14 = sphi 0, %s18
      %p15 = scmp.ge.s32.totalorder %s14, 4
      %s24 = sphi 0, %s26
      %s27 = sphi 0, %s24
      %s28 = sphi 0, %s27
      %s44 = sphi 0, %s28
      %s48 = sphi 0, %s48
      %s50 = sphi 0, %s48
      %s51 = sphi 0, %s50
      %s65 = sphi 0, %s51
      %s69 = sphi 0, %s69
      %s71 = sphi 0, %s69
      %s72 = sphi 0, %s71
      %s86 = sphi 0, %s72
      %s90 = sphi 0, %s90
      %s92 = sphi 0, %s90
      %s93 = sphi 0, %s92
      %s107 = sphi 0, %s93
      %s113 = sphi 0, %s115
      %s116 = sphi 0, %s113
      %s117 = sphi 0, %s116
      %s133 = sphi 0, %s117
    $region4: #{_lambda_.1} parent=1 // loop_header_branch
      %17 = sbr.rel (%p15) target = $region8
    $region5: #{_lambda_.1} parent=1 // loop_body
      %s19 = ssub.s32 %s14, 1
      %s20 = ssub.s32 %s14, 2
      %s21 = sadd.s32 %s14, 1
      %s22 = ssub.s32 %s14, %s21
      %p23 = scmp.eq.s32.totalorder %s22, 0
      %s25 = sadd.s32 %s24, 1
      %s26 = scalar_select %p23, %s24, %s25
      %p29 = pneg %p23
      %p30 = scmp.eq.s32.totalorder %s14, 1
      %p31 = por %p29, %p30
      %p32 = scmp.ne.s32.totalorder %s24, %s27
      %p33 = scmp.eq.s32.totalorder %s14, 0
      %p34 = por %p32, %p33
      %p35 = scmp.ne.s32.totalorder %s24, %s27
      %p36 = scmp.eq.s32.totalorder %s19, 1
      %p37 = por %p35, %p36
      %p38 = scmp.ne.s32.totalorder %s27, %s28
      %p39 = scmp.eq.s32.totalorder %s19, 0
      %p40 = por %p38, %p39
      %p41 = scmp.ne.s32.totalorder %s27, %s28
      %p42 = scmp.eq.s32.totalorder %s20, 1
      %p43 = por %p41, %p42
      %p45 = scmp.ne.s32.totalorder %s28, %s44
      %p46 = scmp.eq.s32.totalorder %s20, 0
      %p47 = por %p45, %p46
      %s49 = sadd.s32 %s48, 1
      %p52 = scmp.eq.s32.totalorder %s14, 1
      %p53 = scmp.ne.s32.totalorder %s48, %s50
      %p54 = scmp.eq.s32.totalorder %s14, 0
      %p55 = por %p53, %p54
      %p56 = scmp.ne.s32.totalorder %s48, %s50
      %p57 = scmp.eq.s32.totalorder %s19, 1
      %p58 = por %p56, %p57
      %p59 = scmp.ne.s32.totalorder %s50, %s51
      %p60 = scmp.eq.s32.totalorder %s19, 0
      %p61 = por %p59, %p60
      %p62 = scmp.ne.s32.totalorder %s50, %s51
      %p63 = scmp.eq.s32.totalorder %s20, 1
      %p64 = por %p62, %p63
      %p66 = scmp.ne.s32.totalorder %s51, %s65
      %p67 = scmp.eq.s32.totalorder %s20, 0
      %p68 = por %p66, %p67
      %s70 = sadd.s32 %s69, 1
      %p73 = scmp.eq.s32.totalorder %s14, 1
      %p74 = scmp.ne.s32.totalorder %s69, %s71
      %p75 = scmp.eq.s32.totalorder %s14, 0
      %p76 = por %p74, %p75
      %p77 = scmp.ne.s32.totalorder %s69, %s71
      %p78 = scmp.eq.s32.totalorder %s19, 1
      %p79 = por %p77, %p78
      %p80 = scmp.ne.s32.totalorder %s71, %s72
      %p81 = scmp.eq.s32.totalorder %s19, 0
      %p82 = por %p80, %p81
      %p83 = scmp.ne.s32.totalorder %s71, %s72
      %p84 = scmp.eq.s32.totalorder %s20, 1
      %p85 = por %p83, %p84
      %p87 = scmp.ne.s32.totalorder %s72, %s86
      %p88 = scmp.eq.s32.totalorder %s20, 0
      %p89 = por %p87, %p88
      %s91 = sadd.s32 %s90, 1
      %p94 = scmp.eq.s32.totalorder %s14, 1
      %p95 = scmp.ne.s32.totalorder %s90, %s92
      %p96 = scmp.eq.s32.totalorder %s14, 0
      %p97 = por %p95, %p96
      %p98 = scmp.ne.s32.totalorder %s90, %s92
      %p99 = scmp.eq.s32.totalorder %s19, 1
      %p100 = por %p98, %p99
      %p101 = scmp.ne.s32.totalorder %s92, %s93
      %p102 = scmp.eq.s32.totalorder %s19, 0
      %p103 = por %p101, %p102
      %p104 = scmp.ne.s32.totalorder %s92, %s93
      %p105 = scmp.eq.s32.totalorder %s20, 1
      %p106 = por %p104, %p105
      %p108 = scmp.ne.s32.totalorder %s93, %s107
      %p109 = scmp.eq.s32.totalorder %s20, 0
      %p110 = por %p108, %p109
      %s111 = ssub.s32 %s14, %s21
      %p112 = scmp.eq.s32.totalorder %s111, 0
      %s114 = sadd.s32 %s113, 1
      %s115 = scalar_select %p112, %s113, %s114
      %p118 = pneg %p112
      %p119 = scmp.eq.s32.totalorder %s14, 1
      %p120 = por %p118, %p119
      %p121 = scmp.ne.s32.totalorder %s113, %s116
      %p122 = scmp.eq.s32.totalorder %s14, 0
      %p123 = por %p121, %p122
      %p124 = scmp.ne.s32.totalorder %s113, %s116
      %p125 = scmp.eq.s32.totalorder %s19, 1
      %p126 = por %p124, %p125
      %p127 = scmp.ne.s32.totalorder %s116, %s117
      %p128 = scmp.eq.s32.totalorder %s19, 0
      %p129 = por %p127, %p128
      %p130 = scmp.ne.s32.totalorder %s116, %s117
      %p131 = scmp.eq.s32.totalorder %s20, 1
      %p132 = por %p130, %p131
      %p134 = scmp.ne.s32.totalorder %s117, %s133
      %p135 = scmp.eq.s32.totalorder %s20, 0
      %p136 = por %p134, %p135
      %p137 = scmp.le.s32.totalorder 1, %s14
      %p138 = scmp.lt.s32.totalorder %s14, 3
      %p139 = pnand %p137, %p138
      %p140 = pneg %p139
      // Predicated region
      $region9: #{_lambda_.1} parent=5 // pred_check
        _
      $region10: #{_lambda_.1} parent=5 // pred_check_branch
        %142 = sbr.rel (%p139) target = $region12
      $region11: #{_lambda_.1} parent=5 // pred_region
        %s143 = ssub.s32 %s14, 1
        // Predicated region
        $region13: #{_lambda_.1} parent=11 // pred_check
          %p144 = pneg %p61
        $region14: #{_lambda_.1} parent=11 // pred_check_branch
          %146 = sbr.rel (%p144) target = $region16
        $region15: #{_lambda_.1} parent=11 // pred_region
          _
        $region16: #{_lambda_.1} parent=11 // pred_fallthru
          _
        // Predicated region
        $region17: #{_lambda_.1} parent=11 // pred_check
          %p147 = pneg %p82
        $region18: #{_lambda_.1} parent=11 // pred_check_branch
          %149 = sbr.rel (%p147) target = $region20
        $region19: #{_lambda_.1} parent=11 // pred_region
          _
        $region20: #{_lambda_.1} parent=11 // pred_fallthru
          _
        // Predicated region
        $region21: #{_lambda_.1} parent=11 // pred_check
          %p150 = pneg %p103
        $region22: #{_lambda_.1} parent=11 // pred_check_branch
          %152 = sbr.rel (%p150) target = $region24
        $region23: #{_lambda_.1} parent=11 // pred_region
          %s154 = ssub.s32 256, 256
          %155 = vsyncadd [#allocation6], %s154
          %s156 = sshll.u32 [#allocation5], 4
          %s157 = int_to_ptr.vmem [resolvable:$true] %s156
          %162 = dma.hbm_to_vmem [thread:$0]  %s3, 256, %s157, [#allocation6], 128, 128, 8
        $region24: #{_lambda_.1} parent=11 // pred_fallthru
          _
      $region12: #{_lambda_.1} parent=5 // pred_fallthru
        _
      %p163 = scmp.lt.s32.totalorder %s14, 2
      // Predicated region
      $region25: #{_lambda_.1} parent=5 // pred_check
        %p164 = pneg %p163
      $region26: #{_lambda_.1} parent=5 // pred_check_branch
        %166 = sbr.rel (%p164) target = $region28
      $region27: #{_lambda_.1} parent=5 // pred_region
        // Predicated region
        $region29: #{_lambda_.1} parent=27 // pred_check
          %p167 = pneg %p34
        $region30: #{_lambda_.1} parent=27 // pred_check_branch
          %169 = sbr.rel (%p167) target = $region32
        $region31: #{_lambda_.1} parent=27 // pred_region
          %s170 = sand.u32 %s24, 1
          %s171 = scalar_lea.sflag [#allocation4], %s170
          %s172 = sand.u32 %s24, 1
          %s173 = smul.addr %s172, 4
          %s174 = scalar_lea.vmem [#allocation3], %s173
          %s176 = ssub.s32 64, 64
          %177 = vsyncadd %s171, %s176
          %s178 = smul.addr %s14, 64
          %s179 = scalar_lea.hbm %s0, %s178
          %s181 = sshll.u32 %s174, 4
          %s182 = int_to_ptr.vmem [resolvable:$true] %s181
          %184 = dma.hbm_to_vmem [thread:$0]  %s179, 64, %s182, %s171
        $region32: #{_lambda_.1} parent=27 // pred_fallthru
          _
      $region28: #{_lambda_.1} parent=5 // pred_fallthru
        _
      %p185 = scmp.le.s32.totalorder 1, %s14
      %p186 = scmp.lt.s32.totalorder %s14, 3
      %p187 = pnand %p185, %p186
      %p188 = pneg %p187
      // Predicated region
      $region33: #{_lambda_.1} parent=5 // pred_check
        _
      $region34: #{_lambda_.1} parent=5 // pred_check_branch
        %190 = sbr.rel (%p187) target = $region36
      $region35: #{_lambda_.1} parent=5 // pred_region
        %s191 = ssub.s32 %s14, 1
        %s192 = sand.u32 %s27, 1
        %s193 = scalar_lea.sflag [#allocation4], %s192
        %s194 = sand.u32 %s27, 1
        %s195 = smul.addr %s194, 4
        %s196 = scalar_lea.vmem [#allocation3], %s195
        // Predicated region
        $region37: #{_lambda_.1} parent=35 // pred_check
          %p197 = pneg %p40
        $region38: #{_lambda_.1} parent=35 // pred_check_branch
          %199 = sbr.rel (%p197) target = $region40
        $region39: #{_lambda_.1} parent=35 // pred_region
          %200 = dma.done %s193, 64
        $region40: #{_lambda_.1} parent=35 // pred_fallthru
          _
        // Predicated region
        $region41: #{_lambda_.1} parent=35 // pred_check
          %p201 = pneg %p103
        $region42: #{_lambda_.1} parent=35 // pred_check_branch
          %203 = sbr.rel (%p201) target = $region44
        $region43: #{_lambda_.1} parent=35 // pred_region
          %204 = dma.done [#allocation6], 256
        $region44: #{_lambda_.1} parent=35 // pred_fallthru
          _
        %s205 = sand.u32 %s27, 1
        %s206 = scalar_lea.sflag [#allocation4], %s205
        %s207 = sand.u32 %s27, 1
        %s208 = smul.addr %s207, 4
        %s209 = scalar_lea.vmem [#allocation3], %s208
        %p210 = pneg %p40
        %p211 = pneg %p37
        %p212 = pneg %p61
        %p213 = pneg %p58
        %p214 = pneg %p82
        %p215 = pneg %p79
        %p216 = pneg %p103
        %p217 = pneg %p100
        %p218 = pneg %p129
        %p219 = pneg %p126
        %p220 = scmp.lt.s32.totalorder %s19, 1
        %s221 = scalar_select %p220, %s19, 1
        %s222 = smul.addr %s221, 2
        %s223 = scalar_lea.vmem %s4, %s222
        %p224 = scmp.lt.s32.totalorder %s19, 1
        %s225 = scalar_select %p224, %s19, 1
        %s226 = smul.addr %s225, 2
        %s227 = scalar_lea.vmem %s4, %s226
        %v228 = vld [vmem:[%s196] sm:$0xf]
        %v229 = vld [vmem:[%s1] sm:$0xff]
        %v230 = vld [vmem:[%s1 + $0x8] sm:$0xff]
        %v231 = vld [vmem:[%s2] sm:$0xff]
        %v232 = vld [vmem:[%s2 + $0x8] sm:$0xff]
        %234 = vset.pattern.permute.xlu0 0
        %235 = vperm.xlu0 %234, %v231
        %v236 = vpop.permute.xlu0 %235
        %239 = vset.pattern.permute.xlu0 0
        %240 = vperm.xlu0 %239, %v232
        %v241 = vpop.permute.xlu0 %240
        %vm243 = vcmask 31744
        %v245 = vsel %vm243, %v229, 0
        %v248 = vsel %vm243, %v230, 0
        %vm250 = vcmask 1043456
        %v252 = vsel %vm250, %v228, 0
        %254 = vmatprep.subr.mxu0 0.0
        %255 = vmatpush1.msra.mxu0 %v252
        %256 = vmatprep.subr.mxu0 0.0
        %257 = vmatpush1.msra.mxu0 0.0
        %258 = vmatprep.subr.mxu0 0.0
        %259 = vmatpush1.msra.mxu0 0.0
        %260 = vmatprep.subr.mxu0 0.0
        %261 = vmatpush1.msra.mxu0 0.0
        %262 = vmatprep.subr.mxu0 0.0
        %263 = vmatpush1.msra.mxu0 0.0
        %264 = vmatprep.subr.mxu0 0.0
        %265 = vmatpush1.msra.mxu0 0.0
        %266 = vmatprep.subr.mxu0 0.0
        %267 = vmatpush1.msra.mxu0 0.0
        %268 = vmatprep.subr.mxu0 0.0
        %269 = vmatpush1.msra.mxu0 0.0
        %270 = vmatprep.subr.mxu0 0.0
        %271 = vmatpush1.msra.mxu0 0.0
        %272 = vmatprep.subr.mxu0 0.0
        %273 = vmatpush1.msra.mxu0 0.0
        %274 = vmatprep.subr.mxu0 0.0
        %275 = vmatpush1.msra.mxu0 0.0
        %276 = vmatprep.subr.mxu0 0.0
        %277 = vmatpush1.msra.mxu0 0.0
        %278 = vmatprep.subr.mxu0 0.0
        %279 = vmatpush1.msra.mxu0 0.0
        %280 = vmatprep.subr.mxu0 0.0
        %281 = vmatpush1.msra.mxu0 0.0
        %282 = vmatprep.subr.mxu0 0.0
        %283 = vmatpush1.msra.mxu0 0.0
        %284 = vmatprep.subr.mxu0 0.0
        %285 = vmatpush1.msra.mxu0 0.0
        %286 = vmatprep.subr.mxu0 0.0
        %287 = vmatpush1.msra.mxu0 0.0
        %288 = vmatprep.subr.mxu0 0.0
        %289 = vmatpush1.msra.mxu0 0.0
        %290 = vmatprep.subr.mxu0 0.0
        %291 = vmatpush1.msra.mxu0 0.0
        %292 = vmatprep.subr.mxu0 0.0
        %293 = vmatpush1.msra.mxu0 0.0
        %294 = vmatprep.subr.mxu0 0.0
        %295 = vmatpush1.msra.mxu0 0.0
        %296 = vmatprep.subr.mxu0 0.0
        %297 = vmatpush1.msra.mxu0 0.0
        %298 = vmatprep.subr.mxu0 0.0
        %299 = vmatpush1.msra.mxu0 0.0
        %300 = vmatprep.subr.mxu0 0.0
        %301 = vmatpush1.msra.mxu0 0.0
        %302 = vmatprep.subr.mxu0 0.0
        %303 = vmatpush1.msra.mxu0 0.0
        %304 = vmatprep.subr.mxu0 0.0
        %305 = vmatpush1.msra.mxu0 0.0
        %306 = vmatprep.subr.mxu0 0.0
        %307 = vmatpush1.msra.mxu0 0.0
        %308 = vmatprep.subr.mxu0 0.0
        %309 = vmatpush1.msra.mxu0 0.0
        %310 = vmatprep.subr.mxu0 0.0
        %311 = vmatpush1.msra.mxu0 0.0
        %312 = vmatprep.subr.mxu0 0.0
        %313 = vmatpush1.msra.mxu0 0.0
        %314 = vmatprep.subr.mxu0 0.0
        %315 = vmatpush1.msra.mxu0 0.0
        %316 = vmatprep.subr.mxu0 0.0
        %317 = vmatpush1.msra.mxu0 0.0
        %318 = vmatprep.mubr.f32.mxu0 0.0
        %319 = vmatmul.mubr.f32.gmra.mrb[0].mxu0 %v245
        %v320 = vpop.f32.mrb[0].mxu0
        %v321 = vadd.f32 %v236, %v320
        %v322 = vpop.f32.mrb[0].mxu0
        %323 = vmatprep.mubr.f32.mxu0 0.0
        %324 = vmatmul.mubr.f32.gmra.mrb[0].mxu0 %v248
        %v325 = vpop.f32.mrb[0].mxu0
        %v326 = vadd.f32 %v241, %v325
        %v327 = vpop.f32.mrb[0].mxu0
        %328 = vdwg.mxu0
        %vm329 = vcmask 15360
        %330 = vst.msk [vmem:[#allocation2] sm:$0xff] %vm329, 0.0
        %331 = vst.msk [vmem:[#allocation2 + $0x8] sm:$0xff] %vm329, 0.0
        %vm332 = vcmask 294160
        %333 = vst.msk [vmem:[#allocation2] sm:$0xff] %vm332, 0.0
        %334 = vst.msk [vmem:[#allocation2 + $0x8] sm:$0xff] %vm332, 0.0
        %337 = vrot.lane.b32.xlu0 %v321, 2
        %v338 = vpop.permute.xlu0 %337
        %339 = vrot.lane.b32.xlu0 %v326, 2
        %v340 = vpop.permute.xlu0 %339
        %vm343 = vcmask 277520
        %344 = vst.msk [vmem:[#allocation2] sm:$0xff] %vm343, %v338
        %345 = vst.msk [vmem:[#allocation2 + $0x8] sm:$0xff] %vm343, %v340
        %v346 = vld [vmem:[#allocation5] sm:$0xff]
        %v347 = vld [vmem:[#allocation5 + $0x8] sm:$0xff]
        %v348 = vld [vmem:[#allocation2] sm:$0xff]
        %v349 = vld [vmem:[#allocation2 + $0x8] sm:$0xff]
        %351 = vset.pattern.permute.xlu0 0
        %352 = vperm.xlu0 %351, %v346
        %v353 = vpop.permute.xlu0 %352
        %356 = vset.pattern.permute.xlu0 0
        %357 = vperm.xlu0 %356, %v347
        %v358 = vpop.permute.xlu0 %357
        %v360 = vmul.f32 %v353, %v348
        %v361 = vmul.f32 %v358, %v349
        %v362 = vadd.f32 %v360, 0.0
        %v363 = vadd.f32 %v361, 0.0
        %364 = vset.pattern.permute.xlu0 1
        %365 = vperm.xlu0 %364, %v346
        %v366 = vpop.permute.xlu0 %365
        %368 = vset.pattern.permute.xlu0 1
        %369 = vperm.xlu0 %368, %v347
        %v370 = vpop.permute.xlu0 %369
        %v372 = vmul.f32 %v366, %v348
        %v373 = vmul.f32 %v370, %v349
        %376 = vrot.lane.b32.xlu0 %v372, 127
        %v377 = vpop.permute.xlu0 %376
        %378 = vrot.lane.b32.xlu0 %v373, 127
        %v379 = vpop.permute.xlu0 %378
        %v382 = vadd.f32 %v362, %v377
        %v383 = vadd.f32 %v363, %v379
        %384 = vset.pattern.permute.xlu0 2
        %385 = vperm.xlu0 %384, %v346
        %v386 = vpop.permute.xlu0 %385
        %388 = vset.pattern.permute.xlu0 2
        %389 = vperm.xlu0 %388, %v347
        %v390 = vpop.permute.xlu0 %389
        %v392 = vmul.f32 %v386, %v348
        %v393 = vmul.f32 %v390, %v349
        %396 = vrot.lane.b32.xlu0 %v392, 126
        %v397 = vpop.permute.xlu0 %396
        %398 = vrot.lane.b32.xlu0 %v393, 126
        %v399 = vpop.permute.xlu0 %398
        %v402 = vadd.f32 %v382, %v397
        %v403 = vadd.f32 %v383, %v399
        %404 = vset.pattern.permute.xlu0 3
        %405 = vperm.xlu0 %404, %v346
        %v406 = vpop.permute.xlu0 %405
        %408 = vset.pattern.permute.xlu0 3
        %409 = vperm.xlu0 %408, %v347
        %v410 = vpop.permute.xlu0 %409
        %v412 = vmul.f32 %v406, %v348
        %v413 = vmul.f32 %v410, %v349
        %416 = vrot.lane.b32.xlu0 %v412, 125
        %v417 = vpop.permute.xlu0 %416
        %418 = vrot.lane.b32.xlu0 %v413, 125
        %v419 = vpop.permute.xlu0 %418
        %v422 = vadd.f32 %v402, %v417
        %v423 = vadd.f32 %v403, %v419
        %424 = vset.pattern.permute.xlu0 4
        %425 = vperm.xlu0 %424, %v346
        %v426 = vpop.permute.xlu0 %425
        %428 = vset.pattern.permute.xlu0 4
        %429 = vperm.xlu0 %428, %v347
        %v430 = vpop.permute.xlu0 %429
        %v432 = vmul.f32 %v426, %v348
        %v433 = vmul.f32 %v430, %v349
        %436 = vrot.lane.b32.xlu0 %v432, 124
        %v437 = vpop.permute.xlu0 %436
        %438 = vrot.lane.b32.xlu0 %v433, 124
        %v439 = vpop.permute.xlu0 %438
        %v442 = vadd.f32 %v422, %v437
        %v443 = vadd.f32 %v423, %v439
        %444 = vset.pattern.permute.xlu0 5
        %445 = vperm.xlu0 %444, %v346
        %v446 = vpop.permute.xlu0 %445
        %448 = vset.pattern.permute.xlu0 5
        %449 = vperm.xlu0 %448, %v347
        %v450 = vpop.permute.xlu0 %449
        %v452 = vadd.f32 %v442, %v446
        %v453 = vadd.f32 %v443, %v450
        %vm454 = vcmask 261120
        %v456 = vsel %vm454, %v452, 0
        %v459 = vsel %vm454, %v453, 0
        %461 = vmatprep.subr.mxu0 0.0
        %462 = vmatpush1.xpose.msra.mxu0 %v456
        %463 = vmatprep.subr.mxu0 0.0
        %464 = vmatpush1.xpose.msra.mxu0 %v459
        %465 = vmatprep.subr.mxu0 0.0
        %466 = vmatpush1.xpose.msra.mxu0 0.0
        %467 = vmatprep.subr.mxu0 0.0
        %468 = vmatpush1.xpose.msra.mxu0 0.0
        %469 = vmatprep.subr.mxu0 0.0
        %470 = vmatpush1.xpose.msra.mxu0 0.0
        %471 = vmatprep.subr.mxu0 0.0
        %472 = vmatpush1.xpose.msra.mxu0 0.0
        %473 = vmatprep.subr.mxu0 0.0
        %474 = vmatpush1.xpose.msra.mxu0 0.0
        %475 = vmatprep.subr.mxu0 0.0
        %476 = vmatpush1.xpose.msra.mxu0 0.0
        %477 = vmatprep.subr.mxu0 0.0
        %478 = vmatpush1.xpose.msra.mxu0 0.0
        %479 = vmatprep.subr.mxu0 0.0
        %480 = vmatpush1.xpose.msra.mxu0 0.0
        %481 = vmatprep.subr.mxu0 0.0
        %482 = vmatpush1.xpose.msra.mxu0 0.0
        %483 = vmatprep.subr.mxu0 0.0
        %484 = vmatpush1.xpose.msra.mxu0 0.0
        %485 = vmatprep.subr.mxu0 0.0
        %486 = vmatpush1.xpose.msra.mxu0 0.0
        %487 = vmatprep.subr.mxu0 0.0
        %488 = vmatpush1.xpose.msra.mxu0 0.0
        %489 = vmatprep.subr.mxu0 0.0
        %490 = vmatpush1.xpose.msra.mxu0 0.0
        %491 = vmatprep.subr.mxu0 0.0
        %492 = vmatpush1.xpose.msra.mxu0 0.0
        %493 = vmatprep.subr.mxu0 0.0
        %494 = vmatpush1.xpose.msra.mxu0 0.0
        %495 = vmatprep.subr.mxu0 0.0
        %496 = vmatpush1.xpose.msra.mxu0 0.0
        %497 = vmatprep.subr.mxu0 0.0
        %498 = vmatpush1.xpose.msra.mxu0 0.0
        %499 = vmatprep.subr.mxu0 0.0
        %500 = vmatpush1.xpose.msra.mxu0 0.0
        %501 = vmatprep.subr.mxu0 0.0
        %502 = vmatpush1.xpose.msra.mxu0 0.0
        %503 = vmatprep.subr.mxu0 0.0
        %504 = vmatpush1.xpose.msra.mxu0 0.0
        %505 = vmatprep.subr.mxu0 0.0
        %506 = vmatpush1.xpose.msra.mxu0 0.0
        %507 = vmatprep.subr.mxu0 0.0
        %508 = vmatpush1.xpose.msra.mxu0 0.0
        %509 = vmatprep.subr.mxu0 0.0
        %510 = vmatpush1.xpose.msra.mxu0 0.0
        %511 = vmatprep.subr.mxu0 0.0
        %512 = vmatpush1.xpose.msra.mxu0 0.0
        %513 = vmatprep.subr.mxu0 0.0
        %514 = vmatpush1.xpose.msra.mxu0 0.0
        %515 = vmatprep.subr.mxu0 0.0
        %516 = vmatpush1.xpose.msra.mxu0 0.0
        %517 = vmatprep.subr.mxu0 0.0
        %518 = vmatpush1.xpose.msra.mxu0 0.0
        %519 = vmatprep.subr.mxu0 0.0
        %520 = vmatpush1.xpose.msra.mxu0 0.0
        %521 = vmatprep.subr.mxu0 0.0
        %522 = vmatpush1.xpose.msra.mxu0 0.0
        %523 = vmatprep.subr.mxu0 0.0
        %524 = vmatpush1.xpose.msra.mxu0 0.0
        %525 = vmatprep.mubr.f32.mxu0 0.0
        %526 = vmatmul.mubr.f32.gmra.mrb[0].mxu0 %v456
        %v527 = vpop.f32.mrb[0].mxu0
        %v528 = vadd.f32 0.0, %v527
        %v529 = vpop.f32.mrb[0].mxu0
        %530 = vmatprep.mubr.f32.mxu0 0.0
        %531 = vmatmul.mubr.f32.gmra.mrb[0].mxu0 %v459
        %v532 = vpop.f32.mrb[0].mxu0
        %v533 = vadd.f32 0.0, %v532
        %v534 = vpop.f32.mrb[0].mxu0
        %535 = vdwg.mxu0
        %v537 = vrot.slane %v528, 1
        %538 = vrot.lane.b32.xlu0 %v537, 16
        %v539 = vpop.permute.xlu0 %538
        %v541 = vrot.slane %v528, 2
        %542 = vrot.lane.b32.xlu0 %v541, 32
        %v543 = vpop.permute.xlu0 %542
        %v545 = vrot.slane %v528, 3
        %546 = vrot.lane.b32.xlu0 %v545, 48
        %v547 = vpop.permute.xlu0 %546
        %v549 = vrot.slane %v528, 4
        %550 = vrot.lane.b32.xlu0 %v549, 64
        %v551 = vpop.permute.xlu0 %550
        %v553 = vrot.slane %v528, 5
        %554 = vrot.lane.b32.xlu0 %v553, 80
        %v555 = vpop.permute.xlu0 %554
        %v557 = vrot.slane %v528, 6
        %558 = vrot.lane.b32.xlu0 %v557, 96
        %v559 = vpop.permute.xlu0 %558
        %v561 = vrot.slane %v528, 7
        %562 = vrot.lane.b32.xlu0 %v561, 112
        %v563 = vpop.permute.xlu0 %562
        %v566 = vrot.slane %v533, 1
        %567 = vrot.lane.b32.xlu0 %v566, 16
        %v568 = vpop.permute.xlu0 %567
        %v570 = vrot.slane %v533, 2
        %571 = vrot.lane.b32.xlu0 %v570, 32
        %v572 = vpop.permute.xlu0 %571
        %v574 = vrot.slane %v533, 3
        %575 = vrot.lane.b32.xlu0 %v574, 48
        %v576 = vpop.permute.xlu0 %575
        %v578 = vrot.slane %v533, 4
        %579 = vrot.lane.b32.xlu0 %v578, 64
        %v580 = vpop.permute.xlu0 %579
        %v582 = vrot.slane %v533, 5
        %583 = vrot.lane.b32.xlu0 %v582, 80
        %v584 = vpop.permute.xlu0 %583
        %v586 = vrot.slane %v533, 6
        %587 = vrot.lane.b32.xlu0 %v586, 96
        %v588 = vpop.permute.xlu0 %587
        %v590 = vrot.slane %v533, 7
        %591 = vrot.lane.b32.xlu0 %v590, 112
        %v592 = vpop.permute.xlu0 %591
        %vm594 = vcmask 130048
        %v595 = vsel %vm594, %v528, %v539
        %v596 = vsel %vm454, %v595, %v543
        %vm597 = vcmask 392192
        %v598 = vsel %vm597, %v596, %v547
        %vm599 = vcmask 523264
        %v600 = vsel %vm599, %v598, %v551
        %vm601 = vcmask 654336
        %v602 = vsel %vm601, %v600, %v555
        %vm603 = vcmask 785408
        %v604 = vsel %vm603, %v602, %v559
        %vm605 = vcmask 916480
        %v606 = vsel %vm605, %v604, %v563
        %v607 = vsel %vm594, %v533, %v568
        %v608 = vsel %vm454, %v607, %v572
        %v609 = vsel %vm597, %v608, %v576
        %v610 = vsel %vm599, %v609, %v580
        %v611 = vsel %vm601, %v610, %v584
        %v612 = vsel %vm603, %v611, %v588
        %v613 = vsel %vm605, %v612, %v592
        %v616 = vcombine.low %v606, %v613
        %v618 = vunpack.c.l.s4 1966171168
        %v619 = vunpack.c.0.s8 %v618
        %v620 = vlaneseq
        %v621 = vshrl.u32 %v620, 7
        %v622 = vsub.s32 %v619, %v621
        %v623 = vrot.slane %v616, %v622
        %v625 = vunpack.c.l.s4 1966171168
        %v626 = vunpack.c.0.s8 %v625
        %v627 = vlaneseq
        %v628 = vshrl.u32 %v627, 7
        %v629 = vsub.s32 %v626, %v628
        %v630 = vrot.slane %v623, %v629
        %v632 = vlaneseq
        %vm633 = vcmp.ge.s32.totalorder %v632, 0
        %vm634 = vcmp.lt.s32.totalorder %v632, 256
        %vm635 = vmand %vm633, %vm634
        %636 = vst.msk [vmem:[%s227] sm:$0x3] %vm635, %v630
        %p637 = scmp.lt.s32.totalorder %s19, 1
        %s638 = scalar_select %p637, %s19, 1
        %s639 = smul.addr %s638, 2
        %s640 = scalar_lea.vmem %s4, %s639
        // Predicated region
        $region45: #{_lambda_.1} parent=35 // pred_check
          %p641 = pneg %p126
        $region46: #{_lambda_.1} parent=35 // pred_check_branch
          %643 = sbr.rel (%p641) target = $region48
        $region47: #{_lambda_.1} parent=35 // pred_region
          _
        $region48: #{_lambda_.1} parent=35 // pred_fallthru
          _
      $region36: #{_lambda_.1} parent=5 // pred_fallthru
        _
      %p644 = scmp.le.s32.totalorder 2, %s14
      // Predicated region
      $region49: #{_lambda_.1} parent=5 // pred_check
        %p645 = pneg %p644
      $region50: #{_lambda_.1} parent=5 // pred_check_branch
        %647 = sbr.rel (%p645) target = $region52
      $region51: #{_lambda_.1} parent=5 // pred_region
        %s648 = ssub.s32 %s14, 2
        // Predicated region
        $region53: #{_lambda_.1} parent=51 // pred_check
          %p649 = pneg %p132
        $region54: #{_lambda_.1} parent=51 // pred_check_branch
          %651 = sbr.rel (%p649) target = $region56
        $region55: #{_lambda_.1} parent=51 // pred_region
          %p652 = scmp.lt.s32.totalorder %s20, 1
          %s653 = scalar_select %p652, %s20, 1
          %s654 = smul.addr %s653, 2
          %s655 = scalar_lea.vmem %s4, %s654
        $region56: #{_lambda_.1} parent=51 // pred_fallthru
          _
      $region52: #{_lambda_.1} parent=5 // pred_fallthru
        _
    $region6: #{_lambda_.1} parent=1 // loop_footer
      %s18 = sadd.s32 1, %s14
    $region7: #{_lambda_.1} parent=1 // loop_footer_branch
      %13 = sbr.rel target = $region3
    $region8: #{_lambda_.1} parent=1 // loop_exit
      _
    %656 = vsyncpa [#allocation4], 1
    %s657 = scalar_lea.sflag [#allocation4], 1
    %658 = vsyncpa %s657, 1
    %659 = vsyncpa [#allocation6], 1

</llo_original>
